<compile_context>
chip_gen: v7x
topology: tpu7x:2x2x1
jax: 0.10.0
libtpu: 0.0.40
codegen_flags: <defaults>
</compile_context>

<pallas_src>
import numpy as np
import jax
import jax.numpy as jnp
from jax.experimental import pallas as pl
from jax.experimental.pallas import tpu as pltpu

MAX_POS = 100.0                 # PCNNEncoder max_pos default
COMPUTE_DTYPE = jnp.bfloat16    # MXU input dtype (f32 accumulation everywhere)
NEG_BIAS = -1e9                 # bias for padded (fake) classes -> softmax 0
LANE = 128
SUBLANE = 16                    # bf16-safe sublane multiple


def _round_up(x, m):
    return (x + m - 1) // m * m


def _vmem_budget():
    """Per-generation scoped-VMEM limit: ~48 MiB on v7x (64 MiB physical),
    ~96 MiB on v5e/v6e (128 MiB physical)."""
    try:
        cap = int(pltpu.get_tpu_info().vmem_capacity_bytes)
    except Exception:
        cap = 64 * 1024 * 1024          # conservative fallback, safe everywhere
    return max(32 * 1024 * 1024, min(cap * 3 // 4, 100 * 1024 * 1024))


# --------------------------------------------------------------------------
# Kernel 1: PCNN conv + piecewise max pool + relu, `bn` sentences per step
# --------------------------------------------------------------------------
def pcnn_kernel(x_ref, padd_ref, w2_ref, b3m_ref, out_ref):
    # x_ref   : (bn*Lpad, D)  bf16  zero-padded embedded sentences, flattened
    # padd_ref: (bn, L, 3)    f32   piece one-hot * MAX_POS
    # w2_ref  : (D, 3*Hp)     bf16  [W_tap0 | W_tap1 | W_tap2], Hp lane-padded
    # b3m_ref : (1, 3*Hp)     f32   conv bias tiled 3x, minus MAX_POS (folded)
    # out_ref : (bn, 3*Hp)    bf16  relu(pooled), piece-major, one dense store
    bn, L, _ = padd_ref.shape
    H3 = w2_ref.shape[1]
    Hp = H3 // 3
    Lpad = x_ref.shape[0] // bn

    # One MXU pass: all three conv taps stacked along the lane-padded output.
    y = jnp.dot(x_ref[...], w2_ref[...],
                preferred_element_type=jnp.float32)          # (bn*Lpad, 3Hp)
    y = y.reshape(bn, Lpad, H3)

    # conv[t] = x[t] @ W0 + x[t+1] @ W1 + x[t+2] @ W2  (bias folded in after
    # the max — it is constant over the pooling axis).  Lane offsets 0/Hp/2Hp
    # are 128-aligned; only the +1/+2 sublane shifts stay unaligned.
    # TODO(synk): replace the +1/+2 sublane shifts with pltpu.roll on the XLU
    # slot to drop the remaining relayout copies.
    conv = (y[:, 0:L, 0:Hp]
            + y[:, 1:L + 1, Hp:2 * Hp]
            + y[:, 2:L + 2, 2 * Hp:H3])                      # (bn, L, Hp) f32

    padd = padd_ref[...]                                     # (bn, L, 3)
    # Module's trick: max(conv + onehot*100, dim=L) - 100 (the -100 lives
    # inside b3m_ref).
    pooled = jnp.concatenate(
        [jnp.max(conv + padd[:, :, p:p + 1], axis=1) for p in range(3)],
        axis=-1)                                             # (bn, 3Hp) f32
    out_ref[...] = jnp.maximum(pooled + b3m_ref[...], 0.0).astype(out_ref.dtype)


def pcnn_encode(x_flat, piece_add, w2, b3m, *, bn, vmem_limit):
    NL, D = x_flat.shape
    Npad, L, _ = piece_add.shape
    Lpad = NL // Npad
    H3 = w2.shape[1]
    return pl.pallas_call(
        pcnn_kernel,
        out_shape=jax.ShapeDtypeStruct((Npad, H3), COMPUTE_DTYPE),
        grid_spec=pltpu.PrefetchScalarGridSpec(
            num_scalar_prefetch=0,
            grid=(Npad // bn,),
            in_specs=[
                # TODO(synk): add pipeline_mode=pl.Buffered(3) here if xprof
                # shows the x slab DMA latency-exposed.
                pl.BlockSpec((bn * Lpad, D), lambda i: (i, 0)),
                pl.BlockSpec((bn, L, 3), lambda i: (i, 0, 0)),
                pl.BlockSpec((D, H3), lambda i: (0, 0)),
                pl.BlockSpec((1, H3), lambda i: (0, 0)),
            ],
            out_specs=pl.BlockSpec((bn, H3), lambda i: (i, 0)),
        ),
        compiler_params=pltpu.CompilerParams(
            dimension_semantics=("parallel",),
            vmem_limit_bytes=vmem_limit),
    )(x_flat, piece_add, w2, b3m)


# --------------------------------------------------------------------------
# Kernel 2: bag "mean" reduction (tiled over N) + label scores + softmax
# --------------------------------------------------------------------------
def extractor_kernel(bagw_ref, feats_ref, lab_ref, bias_ref, out_ref, acc_ref):
    # bagw_ref : (bb, nk)    bf16  row i = 1/len_i over bag i's sentences
    # feats_ref: (nk, F)     bf16  per-sentence PCNN features (piece-major)
    # lab_ref  : (F, Cpad)   bf16  label embeddings (piece-major rows)
    # bias_ref : (1, Cpad)   f32   real classes: bias; padded classes: -1e9
    # out_ref  : (bb, Cpad)  f32   softmax scores
    # acc_ref  : (bb, F)     f32   bag-mean accumulator over the N tiles
    k = pl.program_id(1)

    @pl.when(k == 0)
    def _():
        acc_ref[...] = jnp.zeros_like(acc_ref)

    acc_ref[...] += jnp.dot(bagw_ref[...], feats_ref[...],
                            preferred_element_type=jnp.float32)

    @pl.when(k == pl.num_programs(1) - 1)
    def _():
        scores = jnp.dot(acc_ref[...].astype(COMPUTE_DTYPE), lab_ref[...],
                         preferred_element_type=jnp.float32) + bias_ref[...]
        m = jnp.max(scores, axis=-1, keepdims=True)
        e = jnp.exp(scores - m)
        out_ref[...] = e * pl.reciprocal(jnp.sum(e, axis=-1, keepdims=True),
                                         approx=True)


def extractor_mean(bag_w, feats, lab_t, bias, *, bb, nk, vmem_limit):
    Bpad, Npad2 = bag_w.shape
    F = feats.shape[1]
    Cpad = lab_t.shape[1]
    return pl.pallas_call(
        extractor_kernel,
        out_shape=jax.ShapeDtypeStruct((Bpad, Cpad), jnp.float32),
        grid_spec=pltpu.PrefetchScalarGridSpec(
            num_scalar_prefetch=0,
            grid=(Bpad // bb, Npad2 // nk),
            in_specs=[
                pl.BlockSpec((bb, nk), lambda i, k: (i, k)),
                pl.BlockSpec((nk, F), lambda i, k: (k, 0)),
                pl.BlockSpec((F, Cpad), lambda i, k: (0, 0)),
                pl.BlockSpec((1, Cpad), lambda i, k: (0, 0)),
            ],
            out_specs=pl.BlockSpec((bb, Cpad), lambda i, k: (i, 0)),
            scratch_shapes=[pltpu.VMEM((bb, F), jnp.float32)],
        ),
        compiler_params=pltpu.CompilerParams(
            dimension_semantics=("parallel", "arbitrary"),
            vmem_limit_bytes=vmem_limit),
    )(bag_w, feats, lab_t, bias)


# --------------------------------------------------------------------------
# Forward wrapper (glue in plain JAX / numpy)
# --------------------------------------------------------------------------
def y_s_forward(params, tokens, musk, pos1, pos2, lens):
    N, L = tokens.shape
    assert sum(int(l) for l in lens) == N
    vmem_limit = _vmem_budget()

    # Embedding lookups (gather) + concat — host glue.
    emb = jnp.concatenate(
        [params["word_emb"][tokens],
         params["pos1_emb"][pos1],
         params["pos2_emb"][pos2]], axis=-1)                  # (N, L, D) f32
    D = emb.shape[-1]
    H3 = params["conv_w2"].shape[1]                           # 3 * Hp

    # Block size: cap so the f32 (bn*Lpad, 3Hp) matmul result (+ conv copy)
    # stays within ~1/4 of the per-generation VMEM budget; >= 2 blocks so the
    # 'parallel' grid axis can use both v7x TensorCores.
    Lpad = _round_up(L + 2, 8)             # 1 left conv-pad col + right pad
    per_bn = Lpad * H3 * 4 * 2             # y + conv, f32 bytes per sentence
    bn_cap = max(SUBLANE, (vmem_limit // 4) // per_bn // SUBLANE * SUBLANE)
    bn = int(min(128, bn_cap, max(SUBLANE, _round_up(N, SUBLANE))))
    Npad = max(_round_up(N, bn), 2 * bn)

    x_pad = jnp.pad(emb, ((0, Npad - N), (1, Lpad - L - 1), (0, 0)))
    x_flat = x_pad.reshape(Npad * Lpad, D).astype(COMPUTE_DTYPE)

    musk_oh = params["musk_table"][musk]                      # (N, L, 3)
    piece_add = jnp.pad(musk_oh * MAX_POS,
                        ((0, Npad - N), (0, 0), (0, 0)))      # (Npad, L, 3)
    # TODO(synk): pass integer piece ids and build the +MAX_POS masks
    # in-kernel to shrink this lane-sparse DMA further.

    feats = pcnn_encode(x_flat, piece_add, params["conv_w2"],
                        params["conv_b3m"], bn=bn,
                        vmem_limit=vmem_limit)                # (Npad, 3Hp) bf16

    # Bag "mean" as a (Bpad, Npad2) bf16 weight matrix.
    B = len(lens)
    bb = int(min(128, max(SUBLANE, _round_up(B, SUBLANE))))
    Bpad = max(_round_up(B, bb), 2 * bb)

    # Tile the sentence axis if the feats slab would not fit comfortably.
    if Npad * H3 * 2 <= vmem_limit // 4:
        nk, Npad2 = Npad, Npad
    else:
        nk = 2048
        Npad2 = _round_up(Npad, nk)
        feats = jnp.pad(feats, ((0, Npad2 - Npad), (0, 0)))

    lens_np = np.asarray(lens, np.int64)
    bag_ids = np.repeat(np.arange(B), lens_np)
    bag_w = np.zeros((Bpad, Npad2), np.float32)
    bag_w[bag_ids, np.arange(N)] = (1.0 / np.maximum(lens_np, 1))[bag_ids]
    bag_w = jnp.asarray(bag_w, dtype=COMPUTE_DTYPE)
    # TODO(synk): for very large corpora replace this dense O(B*N) matmul with
    # scalar-prefetched bag offsets/lengths + pl.ds segment-sum.

    scores = extractor_mean(bag_w, feats, params["label_emb_t"],
                            params["ext_bias"], bb=bb, nk=nk,
                            vmem_limit=vmem_limit)            # (Bpad, Cpad)

    # Module-ordered outputs: feats back to PyTorch's flatten f = h*3 + p.
    C = params["n_class"]
    H = params["hidden_size"]
    Hp = H3 // 3
    feats_mod = feats[:N].astype(jnp.float32).reshape(N, 3, Hp)[:, :, :H]
    feats_mod = jnp.transpose(feats_mod, (0, 2, 1)).reshape(N, 3 * H)
    return scores[:B, :C], feats_mod


if __name__ == "__main__":
    # Small, module-consistent dims
    n_word, n_pos = 20, 12
    embed_dim, pos_dim, hidden_dim = 16, 8, 32
    n_class = 4
    L = 16
    lens = [3, 5]
    N = sum(lens)
    D = embed_dim + 2 * pos_dim          # 32
    H = hidden_dim                       # 32
    Hp = _round_up(H, LANE)              # 128: lane-aligned piece blocks
    Cpad = _round_up(n_class, LANE)      # 128: lane-dense extractor store

    # Deterministic parameter init (module seeds where specified)
    rs = np.random.RandomState
    word_emb = rs(7).uniform(-0.1, 0.1, (n_word + 2, embed_dim)).astype(np.float32)
    word_emb[n_word + 1] = 0.0           # padding_idx
    pos1_emb = rs(91).uniform(-0.1, 0.1, (n_pos + 1, pos_dim)).astype(np.float32)
    pos1_emb[n_pos] = 0.0
    pos2_emb = rs(92).uniform(-0.1, 0.1, (n_pos + 1, pos_dim)).astype(np.float32)
    pos2_emb[n_pos] = 0.0

    conv_w = rs(31).uniform(-0.1, 0.1, (H, D, 1, 3)).astype(np.float32)
    conv_b = np.zeros((H,), np.float32)

    # Conv taps stacked along a lane-padded output dim (D, 3*Hp).
    w2 = np.zeros((D, 3 * Hp), np.float32)
    for p in range(3):
        w2[:, p * Hp:p * Hp + H] = conv_w[:, :, 0, p].T
    # Bias tiled 3x minus MAX_POS (folded); padded lanes stay -MAX_POS so they
    # relu to exact zero.
    b3m = np.full((1, 3 * Hp), -MAX_POS, np.float32)
    for p in range(3):
        b3m[0, p * Hp:p * Hp + H] = conv_b - MAX_POS

    # Label embeddings: module's H-major flatten (f=h*3+p) permuted to the
    # kernel's piece-major lane-padded layout (f'=p*Hp+h); padded classes get
    # zero columns + -1e9 bias so the softmax is unchanged.
    label_emb = rs(201).uniform(-0.1, 0.1, (n_class, 3 * H)).astype(np.float32)
    lab3 = label_emb.reshape(n_class, H, 3)
    lab_t = np.zeros((3 * Hp, Cpad), np.float32)
    for p in range(3):
        lab_t[p * Hp:p * Hp + H, :n_class] = lab3[:, :, p].T
    ext_bias = np.full((1, Cpad), NEG_BIAS, np.float32)
    ext_bias[0, :n_class] = 0.0
    musk_table = np.array([[0, 0, 0], [1, 0, 0], [0, 1, 0], [0, 0, 1]],
                          np.float32)

    params = dict(
        word_emb=jnp.asarray(word_emb), pos1_emb=jnp.asarray(pos1_emb),
        pos2_emb=jnp.asarray(pos2_emb),
        conv_w2=jnp.asarray(w2, dtype=COMPUTE_DTYPE),
        conv_b3m=jnp.asarray(b3m),
        label_emb_t=jnp.asarray(lab_t, dtype=COMPUTE_DTYPE),
        ext_bias=jnp.asarray(ext_bias),
        musk_table=jnp.asarray(musk_table),
        n_class=n_class, hidden_size=H,
    )

    # Deterministic example inputs (already concatenated bags; lens splits them)
    key = jax.random.PRNGKey(0)
    k1, k2, k3, k4 = jax.random.split(key, 4)
    tokens = jax.random.randint(k1, (N, L), 0, n_word)
    pos1 = jax.random.randint(k2, (N, L), 0, n_pos)
    pos2 = jax.random.randint(k3, (N, L), 0, n_pos)
    musk = jax.random.randint(k4, (N, L), 1, 4)   # piece ids 1/2/3

    scores, feats = y_s_forward(params, tokens, musk, pos1, pos2, lens)
    scores = np.asarray(jax.block_until_ready(scores))
    feats = np.asarray(jax.block_until_ready(feats))

    # --- Pure-numpy reference (module forward, eval mode) ---
    tok_np, p1_np, p2_np, mu_np = (np.asarray(tokens), np.asarray(pos1),
                                   np.asarray(pos2), np.asarray(musk))
    emb_np = np.concatenate([word_emb[tok_np], pos1_emb[p1_np],
                             pos2_emb[p2_np]], -1)            # (N, L, D)
    xp = np.pad(emb_np, ((0, 0), (1, 1), (0, 0)))
    conv_np = np.zeros((N, L, H), np.float32)
    for kk in range(3):
        conv_np += np.einsum("nld,hd->nlh", xp[:, kk:kk + L, :],
                             conv_w[:, :, 0, kk])
    conv_np += conv_b[None, None, :]
    oh = musk_table[mu_np]                                    # (N, L, 3)
    pooled_np = (conv_np[:, :, :, None]
                 + oh[:, :, None, :] * MAX_POS).max(axis=1) - MAX_POS
    feats_ref = np.maximum(pooled_np.reshape(N, 3 * H), 0.0)  # f = h*3 + p
    B = len(lens)
    red_ref = np.zeros((B, 3 * H), np.float32)
    off = 0
    for i, ln in enumerate(lens):
        red_ref[i] = feats_ref[off:off + ln].mean(0)
        off += ln
    logits_ref = red_ref @ label_emb.T
    probs_ref = np.exp(logits_ref - logits_ref.max(-1, keepdims=True))
    probs_ref /= probs_ref.sum(-1, keepdims=True)

    assert scores.shape == (B, n_class)
    assert feats.shape == (N, 3 * H)
    assert np.all(np.abs(scores.sum(axis=-1) - 1.0) < 2e-2)
    assert np.max(np.abs(feats - feats_ref)) < 0.1
    assert np.max(np.abs(scores - probs_ref)) < 0.1
    print("KERNEL_OK")
</pallas_src>

<mosaic_0001>
module attributes {stable_mosaic.version = 11 : i64} {
  func.func @pcnn_kernel(%arg0: i32, %arg1: memref<384x32xbf16, #tpu.memory_space<vmem>>, %arg2: memref<16x16x3xf32, #tpu.memory_space<vmem>>, %arg3: memref<32x384xbf16, #tpu.memory_space<vmem>>, %arg4: memref<1x384xf32, #tpu.memory_space<vmem>>, %arg5: memref<16x384xbf16, #tpu.memory_space<vmem>>) attributes {dimension_semantics = [#tpu.dimension_semantics<parallel>], iteration_bounds = array<i64: 2>, scalar_prefetch = 0 : i64, scratch_operands = 0 : i64, tpu.core_type = #tpu.core_type<tc>, window_params = [{transform_indices = @transform_0, window_bounds = array<i64: 384, 32>}, {transform_indices = @transform_1, window_bounds = array<i64: 16, 16, 3>}, {pipeline_mode = #tpu.pipeline_mode<synchronous>, transform_indices = @transform_2, window_bounds = array<i64: 32, 384>}, {pipeline_mode = #tpu.pipeline_mode<synchronous>, transform_indices = @transform_3, window_bounds = array<i64: 1, 384>}, {transform_indices = @transform_4, window_bounds = array<i64: 16, 384>}]} {
    %c0 = arith.constant 0 : index
    %c0_0 = arith.constant 0 : index
    %0 = vector.load %arg1[%c0, %c0_0] : memref<384x32xbf16, #tpu.memory_space<vmem>>, vector<384x32xbf16>
    %c0_1 = arith.constant 0 : index
    %c0_2 = arith.constant 0 : index
    %1 = vector.load %arg3[%c0_1, %c0_2] : memref<32x384xbf16, #tpu.memory_space<vmem>>, vector<32x384xbf16>
    %cst = arith.constant dense<0.000000e+00> : vector<384x384xf32>
    %2 = tpu.matmul %0, %1, %cst {dimension_numbers = #tpu.dot_dimension_numbers<[1], [0], [0], [1], [0, 0, 1, 1], [], []>} : vector<384x32xbf16>, vector<32x384xbf16>, vector<384x384xf32> -> vector<384x384xf32>
    %3 = vector.shape_cast %2 : vector<384x384xf32> to vector<16x24x384xf32>
    %4 = vector.extract_strided_slice %3 {offsets = [0, 0, 0], sizes = [16, 16, 128], strides = [1, 1, 1]} : vector<16x24x384xf32> to vector<16x16x128xf32>
    %5 = vector.extract_strided_slice %3 {offsets = [0, 1, 128], sizes = [16, 16, 128], strides = [1, 1, 1]} : vector<16x24x384xf32> to vector<16x16x128xf32>
    %6 = arith.addf %4, %5 : vector<16x16x128xf32>
    %7 = vector.extract_strided_slice %3 {offsets = [0, 2, 256], sizes = [16, 16, 128], strides = [1, 1, 1]} : vector<16x24x384xf32> to vector<16x16x128xf32>
    %8 = arith.addf %6, %7 : vector<16x16x128xf32>
    %c0_3 = arith.constant 0 : index
    %c0_4 = arith.constant 0 : index
    %c0_5 = arith.constant 0 : index
    %9 = vector.load %arg2[%c0_3, %c0_4, %c0_5] : memref<16x16x3xf32, #tpu.memory_space<vmem>>, vector<16x16x3xf32>
    %10 = vector.extract_strided_slice %9 {offsets = [0, 0, 0], sizes = [16, 16, 1], strides = [1, 1, 1]} : vector<16x16x3xf32> to vector<16x16x1xf32>
    %11 = vector.broadcast %10 : vector<16x16x1xf32> to vector<16x16x128xf32>
    %12 = arith.addf %8, %11 : vector<16x16x128xf32>
    %cst_6 = arith.constant dense<0xFF800000> : vector<16x128xf32>
    %13 = vector.multi_reduction <maximumf>, %12, %cst_6 [1] : vector<16x16x128xf32> to vector<16x128xf32>
    %14 = vector.extract_strided_slice %9 {offsets = [0, 0, 1], sizes = [16, 16, 1], strides = [1, 1, 1]} : vector<16x16x3xf32> to vector<16x16x1xf32>
    %15 = vector.broadcast %14 : vector<16x16x1xf32> to vector<16x16x128xf32>
    %16 = arith.addf %8, %15 : vector<16x16x128xf32>
    %cst_7 = arith.constant dense<0xFF800000> : vector<16x128xf32>
    %17 = vector.multi_reduction <maximumf>, %16, %cst_7 [1] : vector<16x16x128xf32> to vector<16x128xf32>
    %18 = vector.extract_strided_slice %9 {offsets = [0, 0, 2], sizes = [16, 16, 1], strides = [1, 1, 1]} : vector<16x16x3xf32> to vector<16x16x1xf32>
    %19 = vector.broadcast %18 : vector<16x16x1xf32> to vector<16x16x128xf32>
    %20 = arith.addf %8, %19 : vector<16x16x128xf32>
    %cst_8 = arith.constant dense<0xFF800000> : vector<16x128xf32>
    %21 = vector.multi_reduction <maximumf>, %20, %cst_8 [1] : vector<16x16x128xf32> to vector<16x128xf32>
    %22 = tpu.concatenate %13, %17, %21 in 1 : vector<16x128xf32>, vector<16x128xf32>, vector<16x128xf32> -> vector<16x384xf32>
    %c0_9 = arith.constant 0 : index
    %c0_10 = arith.constant 0 : index
    %23 = vector.load %arg4[%c0_9, %c0_10] : memref<1x384xf32, #tpu.memory_space<vmem>>, vector<1x384xf32>
    %24 = vector.broadcast %23 : vector<1x384xf32> to vector<16x384xf32>
    %25 = arith.addf %22, %24 : vector<16x384xf32>
    %cst_11 = arith.constant 0.000000e+00 : f32
    %26 = vector.broadcast %cst_11 : f32 to vector<16x384xf32>
    %27 = arith.maximumf %25, %26 : vector<16x384xf32>
    %28 = arith.truncf %27 : vector<16x384xf32> to vector<16x384xbf16>
    %c0_12 = arith.constant 0 : index
    %c0_13 = arith.constant 0 : index
    %29 = vector.load %arg5[%c0_12, %c0_13] : memref<16x384xbf16, #tpu.memory_space<vmem>>, vector<16x384xbf16>
    tpu.vector_store %arg5[%c0_12, %c0_13], %28 {strides = array<i32>} : memref<16x384xbf16, #tpu.memory_space<vmem>>, vector<16x384xbf16>,
    return
  }
  func.func @transform_0(%arg0: i32) -> (i32, i32) {
    %c0_i32 = arith.constant 0 : i32
    %c0_i32_0 = arith.constant 0 : i32
    return %arg0, %c0_i32 : i32, i32
  }
  func.func @transform_1(%arg0: i32) -> (i32, i32, i32) {
    %c0_i32 = arith.constant 0 : i32
    %c0_i32_0 = arith.constant 0 : i32
    %c0_i32_1 = arith.constant 0 : i32
    return %arg0, %c0_i32, %c0_i32_0 : i32, i32, i32
  }
  func.func @transform_2(%arg0: i32) -> (i32, i32) {
    %c0_i32 = arith.constant 0 : i32
    %c0_i32_0 = arith.constant 0 : i32
    %c0_i32_1 = arith.constant 0 : i32
    return %c0_i32, %c0_i32_0 : i32, i32
  }
  func.func @transform_3(%arg0: i32) -> (i32, i32) {
    %c0_i32 = arith.constant 0 : i32
    %c0_i32_0 = arith.constant 0 : i32
    %c0_i32_1 = arith.constant 0 : i32
    return %c0_i32, %c0_i32_0 : i32, i32
  }
  func.func @transform_4(%arg0: i32) -> (i32, i32) {
    %c0_i32 = arith.constant 0 : i32
    %c0_i32_0 = arith.constant 0 : i32
    return %arg0, %c0_i32 : i32, i32
  }
}

</mosaic_0001>

<llo_original>
// kernel: tpu_custom_call.1
$region0: #{tpu_custom_call.1}
  #allocation0 [shape = 'u32[]', space=smem, size = 0x4, offset = 0x4, fixed_abs, tag = 'smem constant byte address 0x4 - core index']
  #allocation1 [shape = 'u32[144,128]{1,0:T(1,128)}', space=vmem, size = 0x12000, scoped, tag = 'internal scratch']
  %s0 = inlined_call_operand.vmem [shape: bf16[768,32], index: 0, kind: input, shape index: {}]
  %s1 = inlined_call_operand.vmem [shape: f32[32,16,3], index: 1, kind: input, shape index: {}]
  %s2 = inlined_call_operand.vmem [shape: bf16[32,384], index: 2, kind: input, shape index: {}]
  %s3 = inlined_call_operand.vmem [shape: f32[1,384], index: 3, kind: input, shape index: {}]
  %s4 = inlined_call_operand.hbm [shape: bf16[32,384], index: 4, kind: output, shape index: {}]
  %s5 = sld [smem:[#allocation0]]
  $region49: #{tpu_custom_call.1} parent=0
    _
  %s7 = ssub.s32 1, %s5
  %s8 = scalar_select 0, %s7, %s5
  $region1: #{tpu_custom_call.1} parent=0
    #allocation2 [shape = 'u8[24576]{0}', space=vmem, size = 0x6000, scoped, tag = 'output window, operand 0']
    #allocation3 [shape = 's32[2]{0}', space=sflag, size = 0x8, scoped, tag = 'scoped memory for tpu_custom_call.1']
    %9 = vsyncpa [#allocation3], 0
    %s10 = scalar_lea.sflag [#allocation3], 1
    %11 = vsyncpa %s10, 0
    loop: start=0, step=1, limit=4
    $region2: #{tpu_custom_call.1} parent=1 // loop_pre_header
      _
    $region3: #{tpu_custom_call.1} parent=1 // loop_header
      %s13 = sphi 0, %s17
      %p14 = scmp.ge.s32.totalorder %s13, 4
      %s23 = sphi 0, %s25
      %s26 = sphi 0, %s23
      %s27 = sphi 0, %s26
      %s43 = sphi 0, %s27
      %s49 = sphi 0, %s51
      %s52 = sphi 0, %s49
      %s53 = sphi 0, %s52
      %s69 = sphi 0, %s53
      %s73 = sphi 0, %s73
      %s75 = sphi 0, %s73
      %s76 = sphi 0, %s75
      %s90 = sphi 0, %s76
      %s94 = sphi 0, %s94
      %s96 = sphi 0, %s94
      %s97 = sphi 0, %s96
      %s111 = sphi 0, %s97
      %s117 = sphi 0, %s119
      %s120 = sphi 0, %s117
      %s121 = sphi 0, %s120
      %s137 = sphi 0, %s121
    $region4: #{tpu_custom_call.1} parent=1 // loop_header_branch
      %16 = sbr.rel (%p14) target = $region8
    $region5: #{tpu_custom_call.1} parent=1 // loop_body
      %s18 = ssub.s32 %s13, 1
      %s19 = ssub.s32 %s13, 2
      %s20 = sadd.s32 %s13, 1
      %s21 = ssub.s32 %s13, %s20
      %p22 = scmp.eq.s32.totalorder %s21, 0
      %s24 = sadd.s32 %s23, 1
      %s25 = scalar_select %p22, %s23, %s24
      %p28 = pneg %p22
      %p29 = scmp.eq.s32.totalorder %s13, 1
      %p30 = por %p28, %p29
      %p31 = scmp.ne.s32.totalorder %s23, %s26
      %p32 = scmp.eq.s32.totalorder %s13, 0
      %p33 = por %p31, %p32
      %p34 = scmp.ne.s32.totalorder %s23, %s26
      %p35 = scmp.eq.s32.totalorder %s18, 1
      %p36 = por %p34, %p35
      %p37 = scmp.ne.s32.totalorder %s26, %s27
      %p38 = scmp.eq.s32.totalorder %s18, 0
      %p39 = por %p37, %p38
      %p40 = scmp.ne.s32.totalorder %s26, %s27
      %p41 = scmp.eq.s32.totalorder %s19, 1
      %p42 = por %p40, %p41
      %p44 = scmp.ne.s32.totalorder %s27, %s43
      %p45 = scmp.eq.s32.totalorder %s19, 0
      %p46 = por %p44, %p45
      %s47 = ssub.s32 %s13, %s20
      %p48 = scmp.eq.s32.totalorder %s47, 0
      %s50 = sadd.s32 %s49, 1
      %s51 = scalar_select %p48, %s49, %s50
      %p54 = pneg %p48
      %p55 = scmp.eq.s32.totalorder %s13, 1
      %p56 = por %p54, %p55
      %p57 = scmp.ne.s32.totalorder %s49, %s52
      %p58 = scmp.eq.s32.totalorder %s13, 0
      %p59 = por %p57, %p58
      %p60 = scmp.ne.s32.totalorder %s49, %s52
      %p61 = scmp.eq.s32.totalorder %s18, 1
      %p62 = por %p60, %p61
      %p63 = scmp.ne.s32.totalorder %s52, %s53
      %p64 = scmp.eq.s32.totalorder %s18, 0
      %p65 = por %p63, %p64
      %p66 = scmp.ne.s32.totalorder %s52, %s53
      %p67 = scmp.eq.s32.totalorder %s19, 1
      %p68 = por %p66, %p67
      %p70 = scmp.ne.s32.totalorder %s53, %s69
      %p71 = scmp.eq.s32.totalorder %s19, 0
      %p72 = por %p70, %p71
      %s74 = sadd.s32 %s73, 1
      %p77 = scmp.eq.s32.totalorder %s13, 1
      %p78 = scmp.ne.s32.totalorder %s73, %s75
      %p79 = scmp.eq.s32.totalorder %s13, 0
      %p80 = por %p78, %p79
      %p81 = scmp.ne.s32.totalorder %s73, %s75
      %p82 = scmp.eq.s32.totalorder %s18, 1
      %p83 = por %p81, %p82
      %p84 = scmp.ne.s32.totalorder %s75, %s76
      %p85 = scmp.eq.s32.totalorder %s18, 0
      %p86 = por %p84, %p85
      %p87 = scmp.ne.s32.totalorder %s75, %s76
      %p88 = scmp.eq.s32.totalorder %s19, 1
      %p89 = por %p87, %p88
      %p91 = scmp.ne.s32.totalorder %s76, %s90
      %p92 = scmp.eq.s32.totalorder %s19, 0
      %p93 = por %p91, %p92
      %s95 = sadd.s32 %s94, 1
      %p98 = scmp.eq.s32.totalorder %s13, 1
      %p99 = scmp.ne.s32.totalorder %s94, %s96
      %p100 = scmp.eq.s32.totalorder %s13, 0
      %p101 = por %p99, %p100
      %p102 = scmp.ne.s32.totalorder %s94, %s96
      %p103 = scmp.eq.s32.totalorder %s18, 1
      %p104 = por %p102, %p103
      %p105 = scmp.ne.s32.totalorder %s96, %s97
      %p106 = scmp.eq.s32.totalorder %s18, 0
      %p107 = por %p105, %p106
      %p108 = scmp.ne.s32.totalorder %s96, %s97
      %p109 = scmp.eq.s32.totalorder %s19, 1
      %p110 = por %p108, %p109
      %p112 = scmp.ne.s32.totalorder %s97, %s111
      %p113 = scmp.eq.s32.totalorder %s19, 0
      %p114 = por %p112, %p113
      %s115 = ssub.s32 %s13, %s20
      %p116 = scmp.eq.s32.totalorder %s115, 0
      %s118 = sadd.s32 %s117, 1
      %s119 = scalar_select %p116, %s117, %s118
      %p122 = pneg %p116
      %p123 = scmp.eq.s32.totalorder %s13, 1
      %p124 = por %p122, %p123
      %p125 = scmp.ne.s32.totalorder %s117, %s120
      %p126 = scmp.eq.s32.totalorder %s13, 0
      %p127 = por %p125, %p126
      %p128 = scmp.ne.s32.totalorder %s117, %s120
      %p129 = scmp.eq.s32.totalorder %s18, 1
      %p130 = por %p128, %p129
      %p131 = scmp.ne.s32.totalorder %s120, %s121
      %p132 = scmp.eq.s32.totalorder %s18, 0
      %p133 = por %p131, %p132
      %p134 = scmp.ne.s32.totalorder %s120, %s121
      %p135 = scmp.eq.s32.totalorder %s19, 1
      %p136 = por %p134, %p135
      %p138 = scmp.ne.s32.totalorder %s121, %s137
      %p139 = scmp.eq.s32.totalorder %s19, 0
      %p140 = por %p138, %p139
      %p141 = scmp.le.s32.totalorder 1, %s13
      %p142 = scmp.lt.s32.totalorder %s13, 3
      %p143 = pnand %p141, %p142
      %p144 = pneg %p143
      // Predicated region
      $region9: #{tpu_custom_call.1} parent=5 // pred_check
        _
      $region10: #{tpu_custom_call.1} parent=5 // pred_check_branch
        %146 = sbr.rel (%p143) target = $region12
      $region11: #{tpu_custom_call.1} parent=5 // pred_region
        %s147 = ssub.s32 %s13, 1
        // Predicated region
        $region13: #{tpu_custom_call.1} parent=11 // pred_check
          %p148 = pneg %p86
        $region14: #{tpu_custom_call.1} parent=11 // pred_check_branch
          %150 = sbr.rel (%p148) target = $region16
        $region15: #{tpu_custom_call.1} parent=11 // pred_region
          _
        $region16: #{tpu_custom_call.1} parent=11 // pred_fallthru
          _
        // Predicated region
        $region17: #{tpu_custom_call.1} parent=11 // pred_check
          %p151 = pneg %p107
        $region18: #{tpu_custom_call.1} parent=11 // pred_check_branch
          %153 = sbr.rel (%p151) target = $region20
        $region19: #{tpu_custom_call.1} parent=11 // pred_region
          _
        $region20: #{tpu_custom_call.1} parent=11 // pred_fallthru
          _
      $region12: #{tpu_custom_call.1} parent=5 // pred_fallthru
        _
      %p154 = scmp.lt.s32.totalorder %s13, 2
      // Predicated region
      $region21: #{tpu_custom_call.1} parent=5 // pred_check
        %p155 = pneg %p154
      $region22: #{tpu_custom_call.1} parent=5 // pred_check_branch
        %157 = sbr.rel (%p155) target = $region24
      $region23: #{tpu_custom_call.1} parent=5 // pred_region
        // Predicated region
        $region25: #{tpu_custom_call.1} parent=23 // pred_check
          %p158 = pneg %p33
        $region26: #{tpu_custom_call.1} parent=23 // pred_check_branch
          %160 = sbr.rel (%p158) target = $region28
        $region27: #{tpu_custom_call.1} parent=23 // pred_region
          %s161 = smul.u32 48, %s13
          %p162 = scmp.lt.s32.totalorder %s161, 95
          %s163 = scalar_select %p162, %s161, 95
          %s164 = smul.addr %s163, 4
          %s165 = scalar_lea.vmem %s0, %s164
          %s166 = smul.u32 48, %s13
        $region28: #{tpu_custom_call.1} parent=23 // pred_fallthru
          _
        // Predicated region
        $region29: #{tpu_custom_call.1} parent=23 // pred_check
          %p167 = pneg %p59
        $region30: #{tpu_custom_call.1} parent=23 // pred_check_branch
          %169 = sbr.rel (%p167) target = $region32
        $region31: #{tpu_custom_call.1} parent=23 // pred_region
          %s170 = smul.u32 16, %s13
          %p171 = scmp.lt.s32.totalorder %s170, 31
          %s172 = scalar_select %p171, %s170, 31
          %s173 = smul.addr %s172, 2
          %s174 = smul.addr %s173, 8
          %s175 = scalar_lea.vmem %s1, %s174
          %s176 = smul.u32 16, %s13
        $region32: #{tpu_custom_call.1} parent=23 // pred_fallthru
          _
      $region24: #{tpu_custom_call.1} parent=5 // pred_fallthru
        _
      %p177 = scmp.le.s32.totalorder 1, %s13
      %p178 = scmp.lt.s32.totalorder %s13, 3
      %p179 = pnand %p177, %p178
      %p180 = pneg %p179
      // Predicated region
      $region33: #{tpu_custom_call.1} parent=5 // pred_check
        _
      $region34: #{tpu_custom_call.1} parent=5 // pred_check_branch
        %182 = sbr.rel (%p179) target = $region36
      $region35: #{tpu_custom_call.1} parent=5 // pred_region
        %s183 = ssub.s32 %s13, 1
        %s184 = smul.u32 48, %s18
        %p185 = scmp.lt.s32.totalorder %s184, 95
        %s186 = scalar_select %p185, %s184, 95
        %s187 = smul.addr %s186, 4
        %s188 = scalar_lea.vmem %s0, %s187
        %p189 = pneg %p39
        %p190 = pneg %p36
        %s191 = smul.u32 16, %s18
        %p192 = scmp.lt.s32.totalorder %s191, 31
        %s193 = scalar_select %p192, %s191, 31
        %s194 = smul.addr %s193, 2
        %s195 = smul.addr %s194, 8
        %s196 = scalar_lea.vmem %s1, %s195
        %p197 = pneg %p65
        %p198 = pneg %p62
        %p199 = pneg %p86
        %p200 = pneg %p83
        %p201 = pneg %p107
        %p202 = pneg %p104
        %p203 = pneg %p133
        %p204 = pneg %p130
        %s205 = sand.u32 %s120, 1
        %s206 = scalar_lea.sflag [#allocation3], %s205
        %s207 = sand.u32 %s120, 1
        %s208 = smul.addr %s207, 24
        %s209 = scalar_lea.vmem [#allocation2], %s208
        %s210 = smul.u32 48, %s18
        %p211 = scmp.lt.s32.totalorder %s210, 95
        %s212 = scalar_select %p211, %s210, 95
        %s213 = smul.addr %s212, 4
        %s214 = scalar_lea.vmem %s0, %s213
        %s215 = smul.u32 48, %s18
        %s216 = smul.u32 16, %s18
        %p217 = scmp.lt.s32.totalorder %s216, 31
        %s218 = scalar_select %p217, %s216, 31
        %s219 = smul.addr %s218, 2
        %s220 = smul.addr %s219, 8
        %s221 = scalar_lea.vmem %s1, %s220
        %s222 = smul.u32 16, %s18
        %s223 = smul.u32 2, %s18
        %v225 = vld [vmem:[%s214] sm:$0xf]
        %v226 = vld [vmem:[%s214 + $0x4] sm:$0xf]
        %v227 = vld [vmem:[%s214 + $0x8] sm:$0xf]
        %v228 = vld [vmem:[%s214 + $0xc] sm:$0xf]
        %v229 = vld [vmem:[%s214 + $0x10] sm:$0xf]
        %v230 = vld [vmem:[%s214 + $0x14] sm:$0xf]
        %v231 = vld [vmem:[%s214 + $0x18] sm:$0xf]
        %v232 = vld [vmem:[%s214 + $0x1c] sm:$0xf]
        %v233 = vld [vmem:[%s214 + $0x20] sm:$0xf]
        %v234 = vld [vmem:[%s214 + $0x24] sm:$0xf]
        %v235 = vld [vmem:[%s214 + $0x28] sm:$0xf]
        %v236 = vld [vmem:[%s214 + $0x2c] sm:$0xf]
        %v237 = vld [vmem:[%s214 + $0x30] sm:$0xf]
        %v238 = vld [vmem:[%s214 + $0x34] sm:$0xf]
        %v239 = vld [vmem:[%s214 + $0x38] sm:$0xf]
        %v240 = vld [vmem:[%s214 + $0x3c] sm:$0xf]
        %v241 = vld [vmem:[%s214 + $0x40] sm:$0xf]
        %v242 = vld [vmem:[%s214 + $0x44] sm:$0xf]
        %v243 = vld [vmem:[%s214 + $0x48] sm:$0xf]
        %v244 = vld [vmem:[%s214 + $0x4c] sm:$0xf]
        %v245 = vld [vmem:[%s214 + $0x50] sm:$0xf]
        %v246 = vld [vmem:[%s214 + $0x54] sm:$0xf]
        %v247 = vld [vmem:[%s214 + $0x58] sm:$0xf]
        %v248 = vld [vmem:[%s214 + $0x5c] sm:$0xf]
        %v249 = vld [vmem:[%s214 + $0x60] sm:$0xf]
        %v250 = vld [vmem:[%s214 + $0x64] sm:$0xf]
        %v251 = vld [vmem:[%s214 + $0x68] sm:$0xf]
        %v252 = vld [vmem:[%s214 + $0x6c] sm:$0xf]
        %v253 = vld [vmem:[%s214 + $0x70] sm:$0xf]
        %v254 = vld [vmem:[%s214 + $0x74] sm:$0xf]
        %v255 = vld [vmem:[%s214 + $0x78] sm:$0xf]
        %v256 = vld [vmem:[%s214 + $0x7c] sm:$0xf]
        %v257 = vld [vmem:[%s214 + $0x80] sm:$0xf]
        %v258 = vld [vmem:[%s214 + $0x84] sm:$0xf]
        %v259 = vld [vmem:[%s214 + $0x88] sm:$0xf]
        %v260 = vld [vmem:[%s214 + $0x8c] sm:$0xf]
        %v261 = vld [vmem:[%s214 + $0x90] sm:$0xf]
        %v262 = vld [vmem:[%s214 + $0x94] sm:$0xf]
        %v263 = vld [vmem:[%s214 + $0x98] sm:$0xf]
        %v264 = vld [vmem:[%s214 + $0x9c] sm:$0xf]
        %v265 = vld [vmem:[%s214 + $0xa0] sm:$0xf]
        %v266 = vld [vmem:[%s214 + $0xa4] sm:$0xf]
        %v267 = vld [vmem:[%s214 + $0xa8] sm:$0xf]
        %v268 = vld [vmem:[%s214 + $0xac] sm:$0xf]
        %v269 = vld [vmem:[%s214 + $0xb0] sm:$0xf]
        %v270 = vld [vmem:[%s214 + $0xb4] sm:$0xf]
        %v271 = vld [vmem:[%s214 + $0xb8] sm:$0xf]
        %v272 = vld [vmem:[%s214 + $0xbc] sm:$0xf]
        %v273 = vld [vmem:[%s2] sm:$0xff]
        %v274 = vld [vmem:[%s2 + $0x8] sm:$0xf]
        %v275 = vld [vmem:[%s2 + $0xc] sm:$0xff]
        %v276 = vld [vmem:[%s2 + $0x14] sm:$0xf]
        %v277 = vld [vmem:[%s2 + $0x18] sm:$0xff]
        %v278 = vld [vmem:[%s2 + $0x20] sm:$0xf]
        %v279 = vld [vmem:[%s2 + $0x24] sm:$0xff]
        %v280 = vld [vmem:[%s2 + $0x2c] sm:$0xf]
        %v329 = vunpack.c.l.b16 %v225
        %v330 = vunpack.c.l.b16 %v226
        %v331 = vunpack.c.l.b16 %v227
        %v332 = vunpack.c.l.b16 %v228
        %v333 = vunpack.c.l.b16 %v229
        %v334 = vunpack.c.l.b16 %v230
        %v335 = vunpack.c.l.b16 %v231
        %v336 = vunpack.c.l.b16 %v232
        %v337 = vunpack.c.l.b16 %v233
        %v338 = vunpack.c.l.b16 %v234
        %v339 = vunpack.c.l.b16 %v235
        %v340 = vunpack.c.l.b16 %v236
        %v341 = vunpack.c.l.b16 %v237
        %v342 = vunpack.c.l.b16 %v238
        %v343 = vunpack.c.l.b16 %v239
        %v344 = vunpack.c.l.b16 %v240
        %v345 = vunpack.c.l.b16 %v241
        %v346 = vunpack.c.l.b16 %v242
        %v347 = vunpack.c.l.b16 %v243
        %v348 = vunpack.c.l.b16 %v244
        %v349 = vunpack.c.l.b16 %v245
        %v350 = vunpack.c.l.b16 %v246
        %v351 = vunpack.c.l.b16 %v247
        %v352 = vunpack.c.l.b16 %v248
        %v353 = vunpack.c.l.b16 %v249
        %v354 = vunpack.c.l.b16 %v250
        %v355 = vunpack.c.l.b16 %v251
        %v356 = vunpack.c.l.b16 %v252
        %v357 = vunpack.c.l.b16 %v253
        %v358 = vunpack.c.l.b16 %v254
        %v359 = vunpack.c.l.b16 %v255
        %v360 = vunpack.c.l.b16 %v256
        %v361 = vunpack.c.l.b16 %v257
        %v362 = vunpack.c.l.b16 %v258
        %v363 = vunpack.c.l.b16 %v259
        %v364 = vunpack.c.l.b16 %v260
        %v365 = vunpack.c.l.b16 %v261
        %v366 = vunpack.c.l.b16 %v262
        %v367 = vunpack.c.l.b16 %v263
        %v368 = vunpack.c.l.b16 %v264
        %v369 = vunpack.c.l.b16 %v265
        %v370 = vunpack.c.l.b16 %v266
        %v371 = vunpack.c.l.b16 %v267
        %v372 = vunpack.c.l.b16 %v268
        %v373 = vunpack.c.l.b16 %v269
        %v374 = vunpack.c.l.b16 %v270
        %v375 = vunpack.c.l.b16 %v271
        %v376 = vunpack.c.l.b16 %v272
        %v377 = vpack.c.b16 %v330, %v329
        %v378 = vpack.c.b16 %v332, %v331
        %v379 = vpack.c.b16 %v334, %v333
        %v380 = vpack.c.b16 %v336, %v335
        %v381 = vpack.c.b16 %v338, %v337
        %v382 = vpack.c.b16 %v340, %v339
        %v383 = vpack.c.b16 %v342, %v341
        %v384 = vpack.c.b16 %v344, %v343
        %v385 = vpack.c.b16 %v346, %v345
        %v386 = vpack.c.b16 %v348, %v347
        %v387 = vpack.c.b16 %v350, %v349
        %v388 = vpack.c.b16 %v352, %v351
        %v389 = vpack.c.b16 %v354, %v353
        %v390 = vpack.c.b16 %v356, %v355
        %v391 = vpack.c.b16 %v358, %v357
        %v392 = vpack.c.b16 %v360, %v359
        %v393 = vpack.c.b16 %v362, %v361
        %v394 = vpack.c.b16 %v364, %v363
        %v395 = vpack.c.b16 %v366, %v365
        %v396 = vpack.c.b16 %v368, %v367
        %v397 = vpack.c.b16 %v370, %v369
        %v398 = vpack.c.b16 %v372, %v371
        %v399 = vpack.c.b16 %v374, %v373
        %v400 = vpack.c.b16 %v376, %v375
        %v409 = vunpack.c.l.b16 %v273
        %v410 = vunpack.c.h.b16 %v273
        %v411 = vunpack.c.l.b16 %v274
        %v412 = vunpack.c.l.b16 %v275
        %v413 = vunpack.c.h.b16 %v275
        %v414 = vunpack.c.l.b16 %v276
        %v415 = vunpack.c.l.b16 %v277
        %v416 = vunpack.c.h.b16 %v277
        %v417 = vunpack.c.l.b16 %v278
        %v418 = vunpack.c.l.b16 %v279
        %v419 = vunpack.c.h.b16 %v279
        %v420 = vunpack.c.l.b16 %v280
        %v421 = vpack.c.b16 %v412, %v409
        %v422 = vpack.c.b16 %v413, %v410
        %v423 = vpack.c.b16 %v414, %v411
        %v424 = vpack.c.b16 %v418, %v415
        %v425 = vpack.c.b16 %v419, %v416
        %v426 = vpack.c.b16 %v420, %v417
        %vm433 = vcmask 261120
        %v435 = vsel %vm433, %v377, 0
        %v438 = vsel %vm433, %v378, 0
        %v441 = vsel %vm433, %v379, 0
        %v444 = vsel %vm433, %v380, 0
        %v447 = vsel %vm433, %v381, 0
        %v450 = vsel %vm433, %v382, 0
        %v453 = vsel %vm433, %v383, 0
        %v456 = vsel %vm433, %v384, 0
        %v459 = vsel %vm433, %v385, 0
        %v462 = vsel %vm433, %v386, 0
        %v465 = vsel %vm433, %v387, 0
        %v468 = vsel %vm433, %v388, 0
        %v471 = vsel %vm433, %v389, 0
        %v474 = vsel %vm433, %v390, 0
        %v477 = vsel %vm433, %v391, 0
        %v480 = vsel %vm433, %v392, 0
        %v483 = vsel %vm433, %v393, 0
        %v486 = vsel %vm433, %v394, 0
        %v489 = vsel %vm433, %v395, 0
        %v492 = vsel %vm433, %v396, 0
        %v495 = vsel %vm433, %v397, 0
        %v498 = vsel %vm433, %v398, 0
        %v501 = vsel %vm433, %v399, 0
        %v504 = vsel %vm433, %v400, 0
        %506 = vmatprep.subr.bf16.mxu0 %v422
        %507 = vmatpush1.bf16.msra.mxu0 %v421
        %508 = vmatprep.subr.bf16.mxu0 %v425
        %509 = vmatpush1.bf16.msra.mxu0 %v424
        %510 = vmatprep.subr.bf16.mxu0 0
        %511 = vmatpush1.bf16.msra.mxu0 0
        %512 = vmatprep.subr.bf16.mxu0 0
        %513 = vmatpush1.bf16.msra.mxu0 0
        %514 = vmatprep.subr.bf16.mxu0 0
        %515 = vmatpush1.bf16.msra.mxu0 0
        %516 = vmatprep.subr.bf16.mxu0 0
        %517 = vmatpush1.bf16.msra.mxu0 0
        %518 = vmatprep.subr.bf16.mxu0 0
        %519 = vmatpush1.bf16.msra.mxu0 0
        %520 = vmatprep.subr.bf16.mxu0 0
        %521 = vmatpush1.bf16.msra.mxu0 0
        %522 = vmatprep.subr.bf16.mxu0 0
        %523 = vmatpush1.bf16.msra.mxu0 0
        %524 = vmatprep.subr.bf16.mxu0 0
        %525 = vmatpush1.bf16.msra.mxu0 0
        %526 = vmatprep.subr.bf16.mxu0 0
        %527 = vmatpush1.bf16.msra.mxu0 0
        %528 = vmatprep.subr.bf16.mxu0 0
        %529 = vmatpush1.bf16.msra.mxu0 0
        %530 = vmatprep.subr.bf16.mxu0 0
        %531 = vmatpush1.bf16.msra.mxu0 0
        %532 = vmatprep.subr.bf16.mxu0 0
        %533 = vmatpush1.bf16.msra.mxu0 0
        %534 = vmatprep.subr.bf16.mxu0 0
        %535 = vmatpush1.bf16.msra.mxu0 0
        %536 = vmatprep.subr.bf16.mxu0 0
        %537 = vmatpush1.bf16.msra.mxu0 0
        %538 = vmatprep.mubr.bf16.mxu0 0
        %539 = vmatmul.mubr.bf16.gmra.mrb[0].mxu0 %v435
        %v540 = vpop.f32.mrb[0].mxu0
        %v541 = vadd.f32 0.0, %v540
        %v542 = vpop.f32.mrb[0].mxu0
        %v543 = vadd.f32 0.0, %v542
        %v544 = vpop.f32.mrb[0].mxu0
        %v545 = vadd.f32 0.0, %v544
        %v546 = vpop.f32.mrb[0].mxu0
        %v547 = vadd.f32 0.0, %v546
        %548 = vmatprep.mubr.bf16.mxu0 0
        %549 = vmatmul.mubr.bf16.gmra.mrb[0].mxu0 %v438
        %v550 = vpop.f32.mrb[0].mxu0
        %v551 = vpop.f32.mrb[0].mxu0
        %v552 = vadd.f32 0.0, %v551
        %v553 = vpop.f32.mrb[0].mxu0
        %v554 = vadd.f32 0.0, %v553
        %v555 = vpop.f32.mrb[0].mxu0
        %v556 = vadd.f32 0.0, %v555
        %557 = vmatprep.mubr.bf16.mxu0 0
        %558 = vmatmul.mubr.bf16.gmra.mrb[0].mxu0 %v441
        %v559 = vpop.f32.mrb[0].mxu0
        %v560 = vadd.f32 0.0, %v559
        %v561 = vpop.f32.mrb[0].mxu0
        %v562 = vadd.f32 0.0, %v561
        %v563 = vpop.f32.mrb[0].mxu0
        %v564 = vpop.f32.mrb[0].mxu0
        %v565 = vadd.f32 0.0, %v564
        %566 = vmatprep.mubr.bf16.mxu0 0
        %567 = vmatmul.mubr.bf16.gmra.mrb[0].mxu0 %v444
        %v568 = vpop.f32.mrb[0].mxu0
        %v569 = vadd.f32 0.0, %v568
        %v570 = vpop.f32.mrb[0].mxu0
        %v571 = vadd.f32 0.0, %v570
        %v572 = vpop.f32.mrb[0].mxu0
        %v573 = vadd.f32 0.0, %v572
        %v574 = vpop.f32.mrb[0].mxu0
        %v575 = vadd.f32 0.0, %v574
        %576 = vmatprep.mubr.bf16.mxu0 0
        %577 = vmatmul.mubr.bf16.gmra.mrb[0].mxu0 %v447
        %v578 = vpop.f32.mrb[0].mxu0
        %v579 = vpop.f32.mrb[0].mxu0
        %v580 = vadd.f32 0.0, %v579
        %v581 = vpop.f32.mrb[0].mxu0
        %v582 = vadd.f32 0.0, %v581
        %v583 = vpop.f32.mrb[0].mxu0
        %v584 = vadd.f32 0.0, %v583
        %585 = vmatprep.mubr.bf16.mxu0 0
        %586 = vmatmul.mubr.bf16.gmra.mrb[0].mxu0 %v450
        %v587 = vpop.f32.mrb[0].mxu0
        %v588 = vadd.f32 0.0, %v587
        %v589 = vpop.f32.mrb[0].mxu0
        %v590 = vadd.f32 0.0, %v589
        %v591 = vpop.f32.mrb[0].mxu0
        %v592 = vpop.f32.mrb[0].mxu0
        %v593 = vadd.f32 0.0, %v592
        %594 = vmatprep.mubr.bf16.mxu0 0
        %595 = vmatmul.mubr.bf16.gmra.mrb[0].mxu0 %v453
        %v596 = vpop.f32.mrb[0].mxu0
        %v597 = vadd.f32 0.0, %v596
        %v598 = vpop.f32.mrb[0].mxu0
        %v599 = vadd.f32 0.0, %v598
        %v600 = vpop.f32.mrb[0].mxu0
        %v601 = vadd.f32 0.0, %v600
        %v602 = vpop.f32.mrb[0].mxu0
        %v603 = vadd.f32 0.0, %v602
        %604 = vmatprep.mubr.bf16.mxu0 0
        %605 = vmatmul.mubr.bf16.gmra.mrb[0].mxu0 %v456
        %v606 = vpop.f32.mrb[0].mxu0
        %v607 = vpop.f32.mrb[0].mxu0
        %v608 = vadd.f32 0.0, %v607
        %v609 = vpop.f32.mrb[0].mxu0
        %v610 = vadd.f32 0.0, %v609
        %v611 = vpop.f32.mrb[0].mxu0
        %v612 = vadd.f32 0.0, %v611
        %613 = vmatprep.mubr.bf16.mxu0 0
        %614 = vmatmul.mubr.bf16.gmra.mrb[0].mxu0 %v459
        %v615 = vpop.f32.mrb[0].mxu0
        %v616 = vadd.f32 0.0, %v615
        %v617 = vpop.f32.mrb[0].mxu0
        %v618 = vadd.f32 0.0, %v617
        %v619 = vpop.f32.mrb[0].mxu0
        %v620 = vpop.f32.mrb[0].mxu0
        %v621 = vadd.f32 0.0, %v620
        %622 = vmatprep.mubr.bf16.mxu0 0
        %623 = vmatmul.mubr.bf16.gmra.mrb[0].mxu0 %v462
        %v624 = vpop.f32.mrb[0].mxu0
        %v625 = vadd.f32 0.0, %v624
        %v626 = vpop.f32.mrb[0].mxu0
        %v627 = vadd.f32 0.0, %v626
        %v628 = vpop.f32.mrb[0].mxu0
        %v629 = vadd.f32 0.0, %v628
        %v630 = vpop.f32.mrb[0].mxu0
        %v631 = vadd.f32 0.0, %v630
        %632 = vmatprep.mubr.bf16.mxu0 0
        %633 = vmatmul.mubr.bf16.gmra.mrb[0].mxu0 %v465
        %v634 = vpop.f32.mrb[0].mxu0
        %v635 = vpop.f32.mrb[0].mxu0
        %v636 = vadd.f32 0.0, %v635
        %v637 = vpop.f32.mrb[0].mxu0
        %v638 = vadd.f32 0.0, %v637
        %v639 = vpop.f32.mrb[0].mxu0
        %v640 = vadd.f32 0.0, %v639
        %641 = vmatprep.mubr.bf16.mxu0 0
        %642 = vmatmul.mubr.bf16.gmra.mrb[0].mxu0 %v468
        %v643 = vpop.f32.mrb[0].mxu0
        %v644 = vadd.f32 0.0, %v643
        %v645 = vpop.f32.mrb[0].mxu0
        %v646 = vadd.f32 0.0, %v645
        %v647 = vpop.f32.mrb[0].mxu0
        %v648 = vpop.f32.mrb[0].mxu0
        %v649 = vadd.f32 0.0, %v648
        %650 = vmatprep.mubr.bf16.mxu0 0
        %651 = vmatmul.mubr.bf16.gmra.mrb[0].mxu0 %v471
        %v652 = vpop.f32.mrb[0].mxu0
        %v653 = vadd.f32 0.0, %v652
        %v654 = vpop.f32.mrb[0].mxu0
        %v655 = vadd.f32 0.0, %v654
        %v656 = vpop.f32.mrb[0].mxu0
        %v657 = vadd.f32 0.0, %v656
        %v658 = vpop.f32.mrb[0].mxu0
        %v659 = vadd.f32 0.0, %v658
        %660 = vmatprep.mubr.bf16.mxu0 0
        %661 = vmatmul.mubr.bf16.gmra.mrb[0].mxu0 %v474
        %v662 = vpop.f32.mrb[0].mxu0
        %v663 = vpop.f32.mrb[0].mxu0
        %v664 = vadd.f32 0.0, %v663
        %v665 = vpop.f32.mrb[0].mxu0
        %v666 = vadd.f32 0.0, %v665
        %v667 = vpop.f32.mrb[0].mxu0
        %v668 = vadd.f32 0.0, %v667
        %669 = vmatprep.mubr.bf16.mxu0 0
        %670 = vmatmul.mubr.bf16.gmra.mrb[0].mxu0 %v477
        %v671 = vpop.f32.mrb[0].mxu0
        %v672 = vadd.f32 0.0, %v671
        %v673 = vpop.f32.mrb[0].mxu0
        %v674 = vadd.f32 0.0, %v673
        %v675 = vpop.f32.mrb[0].mxu0
        %v676 = vpop.f32.mrb[0].mxu0
        %v677 = vadd.f32 0.0, %v676
        %678 = vmatprep.mubr.bf16.mxu0 0
        %679 = vmatmul.mubr.bf16.gmra.mrb[0].mxu0 %v480
        %v680 = vpop.f32.mrb[0].mxu0
        %v681 = vadd.f32 0.0, %v680
        %v682 = vpop.f32.mrb[0].mxu0
        %v683 = vadd.f32 0.0, %v682
        %v684 = vpop.f32.mrb[0].mxu0
        %v685 = vadd.f32 0.0, %v684
        %v686 = vpop.f32.mrb[0].mxu0
        %v687 = vadd.f32 0.0, %v686
        %688 = vmatprep.mubr.bf16.mxu0 0
        %689 = vmatmul.mubr.bf16.gmra.mrb[0].mxu0 %v483
        %v690 = vpop.f32.mrb[0].mxu0
        %v691 = vpop.f32.mrb[0].mxu0
        %v692 = vadd.f32 0.0, %v691
        %v693 = vpop.f32.mrb[0].mxu0
        %v694 = vadd.f32 0.0, %v693
        %v695 = vpop.f32.mrb[0].mxu0
        %v696 = vadd.f32 0.0, %v695
        %697 = vmatprep.mubr.bf16.mxu0 0
        %698 = vmatmul.mubr.bf16.gmra.mrb[0].mxu0 %v486
        %v699 = vpop.f32.mrb[0].mxu0
        %v700 = vadd.f32 0.0, %v699
        %v701 = vpop.f32.mrb[0].mxu0
        %v702 = vadd.f32 0.0, %v701
        %v703 = vpop.f32.mrb[0].mxu0
        %v704 = vpop.f32.mrb[0].mxu0
        %v705 = vadd.f32 0.0, %v704
        %706 = vmatprep.mubr.bf16.mxu0 0
        %707 = vmatmul.mubr.bf16.gmra.mrb[0].mxu0 %v489
        %v708 = vpop.f32.mrb[0].mxu0
        %v709 = vadd.f32 0.0, %v708
        %v710 = vpop.f32.mrb[0].mxu0
        %v711 = vadd.f32 0.0, %v710
        %v712 = vpop.f32.mrb[0].mxu0
        %v713 = vadd.f32 0.0, %v712
        %v714 = vpop.f32.mrb[0].mxu0
        %v715 = vadd.f32 0.0, %v714
        %716 = vmatprep.mubr.bf16.mxu0 0
        %717 = vmatmul.mubr.bf16.gmra.mrb[0].mxu0 %v492
        %v718 = vpop.f32.mrb[0].mxu0
        %v719 = vpop.f32.mrb[0].mxu0
        %v720 = vadd.f32 0.0, %v719
        %v721 = vpop.f32.mrb[0].mxu0
        %v722 = vadd.f32 0.0, %v721
        %v723 = vpop.f32.mrb[0].mxu0
        %v724 = vadd.f32 0.0, %v723
        %725 = vmatprep.mubr.bf16.mxu0 0
        %726 = vmatmul.mubr.bf16.gmra.mrb[0].mxu0 %v495
        %v727 = vpop.f32.mrb[0].mxu0
        %v728 = vadd.f32 0.0, %v727
        %v729 = vpop.f32.mrb[0].mxu0
        %v730 = vadd.f32 0.0, %v729
        %v731 = vpop.f32.mrb[0].mxu0
        %v732 = vpop.f32.mrb[0].mxu0
        %v733 = vadd.f32 0.0, %v732
        %734 = vmatprep.mubr.bf16.mxu0 0
        %735 = vmatmul.mubr.bf16.gmra.mrb[0].mxu0 %v498
        %v736 = vpop.f32.mrb[0].mxu0
        %v737 = vadd.f32 0.0, %v736
        %v738 = vpop.f32.mrb[0].mxu0
        %v739 = vadd.f32 0.0, %v738
        %v740 = vpop.f32.mrb[0].mxu0
        %v741 = vadd.f32 0.0, %v740
        %v742 = vpop.f32.mrb[0].mxu0
        %v743 = vadd.f32 0.0, %v742
        %744 = vmatprep.mubr.bf16.mxu0 0
        %745 = vmatmul.mubr.bf16.gmra.mrb[0].mxu0 %v501
        %v746 = vpop.f32.mrb[0].mxu0
        %v747 = vpop.f32.mrb[0].mxu0
        %v748 = vadd.f32 0.0, %v747
        %v749 = vpop.f32.mrb[0].mxu0
        %v750 = vadd.f32 0.0, %v749
        %v751 = vpop.f32.mrb[0].mxu0
        %v752 = vadd.f32 0.0, %v751
        %753 = vmatprep.mubr.bf16.mxu0 0
        %754 = vmatmul.mubr.bf16.gmra.mrb[0].mxu0 %v504
        %v755 = vpop.f32.mrb[0].mxu0
        %v756 = vadd.f32 0.0, %v755
        %v757 = vpop.f32.mrb[0].mxu0
        %v758 = vadd.f32 0.0, %v757
        %v759 = vpop.f32.mrb[0].mxu0
        %v760 = vpop.f32.mrb[0].mxu0
        %v761 = vadd.f32 0.0, %v760
        %762 = vdwg.mxu0
        %763 = vmatprep.subr.bf16.mxu0 0
        %764 = vmatpush1.bf16.msra.mxu0 %v423
        %765 = vmatprep.subr.bf16.mxu0 0
        %766 = vmatpush1.bf16.msra.mxu0 %v426
        %767 = vmatprep.subr.bf16.mxu0 0
        %768 = vmatpush1.bf16.msra.mxu0 0
        %769 = vmatprep.subr.bf16.mxu0 0
        %770 = vmatpush1.bf16.msra.mxu0 0
        %771 = vmatprep.subr.bf16.mxu0 0
        %772 = vmatpush1.bf16.msra.mxu0 0
        %773 = vmatprep.subr.bf16.mxu0 0
        %774 = vmatpush1.bf16.msra.mxu0 0
        %775 = vmatprep.subr.bf16.mxu0 0
        %776 = vmatpush1.bf16.msra.mxu0 0
        %777 = vmatprep.subr.bf16.mxu0 0
        %778 = vmatpush1.bf16.msra.mxu0 0
        %779 = vmatprep.subr.bf16.mxu0 0
        %780 = vmatpush1.bf16.msra.mxu0 0
        %781 = vmatprep.subr.bf16.mxu0 0
        %782 = vmatpush1.bf16.msra.mxu0 0
        %783 = vmatprep.subr.bf16.mxu0 0
        %784 = vmatpush1.bf16.msra.mxu0 0
        %785 = vmatprep.subr.bf16.mxu0 0
        %786 = vmatpush1.bf16.msra.mxu0 0
        %787 = vmatprep.subr.bf16.mxu0 0
        %788 = vmatpush1.bf16.msra.mxu0 0
        %789 = vmatprep.subr.bf16.mxu0 0
        %790 = vmatpush1.bf16.msra.mxu0 0
        %791 = vmatprep.subr.bf16.mxu0 0
        %792 = vmatpush1.bf16.msra.mxu0 0
        %793 = vmatprep.subr.bf16.mxu0 0
        %794 = vmatpush1.bf16.msra.mxu0 0
        %795 = vmatprep.mubr.bf16.mxu0 0
        %796 = vmatmul.mubr.bf16.gmra.mrb[0].mxu0 %v435
        %v797 = vpop.f32.mrb[0].mxu0
        %v798 = vadd.f32 0.0, %v797
        %v799 = vpop.f32.mrb[0].mxu0
        %v800 = vpop.f32.mrb[0].mxu0
        %v801 = vadd.f32 0.0, %v800
        %v802 = vpop.f32.mrb[0].mxu0
        %803 = vmatprep.mubr.bf16.mxu0 0
        %804 = vmatmul.mubr.bf16.gmra.mrb[0].mxu0 %v438
        %v805 = vpop.f32.mrb[0].mxu0
        %v806 = vadd.f32 0.0, %v805
        %v807 = vpop.f32.mrb[0].mxu0
        %v808 = vpop.f32.mrb[0].mxu0
        %v809 = vadd.f32 0.0, %v808
        %v810 = vpop.f32.mrb[0].mxu0
        %811 = vmatprep.mubr.bf16.mxu0 0
        %812 = vmatmul.mubr.bf16.gmra.mrb[0].mxu0 %v441
        %v813 = vpop.f32.mrb[0].mxu0
        %v814 = vadd.f32 0.0, %v813
        %v815 = vpop.f32.mrb[0].mxu0
        %v816 = vpop.f32.mrb[0].mxu0
        %v817 = vadd.f32 0.0, %v816
        %v818 = vpop.f32.mrb[0].mxu0
        %819 = vmatprep.mubr.bf16.mxu0 0
        %820 = vmatmul.mubr.bf16.gmra.mrb[0].mxu0 %v444
        %v821 = vpop.f32.mrb[0].mxu0
        %v822 = vadd.f32 0.0, %v821
        %v823 = vpop.f32.mrb[0].mxu0
        %v824 = vpop.f32.mrb[0].mxu0
        %v825 = vadd.f32 0.0, %v824
        %v826 = vpop.f32.mrb[0].mxu0
        %827 = vmatprep.mubr.bf16.mxu0 0
        %828 = vmatmul.mubr.bf16.gmra.mrb[0].mxu0 %v447
        %v829 = vpop.f32.mrb[0].mxu0
        %v830 = vadd.f32 0.0, %v829
        %v831 = vpop.f32.mrb[0].mxu0
        %v832 = vpop.f32.mrb[0].mxu0
        %v833 = vadd.f32 0.0, %v832
        %v834 = vpop.f32.mrb[0].mxu0
        %835 = vmatprep.mubr.bf16.mxu0 0
        %836 = vmatmul.mubr.bf16.gmra.mrb[0].mxu0 %v450
        %v837 = vpop.f32.mrb[0].mxu0
        %v838 = vadd.f32 0.0, %v837
        %v839 = vpop.f32.mrb[0].mxu0
        %v840 = vpop.f32.mrb[0].mxu0
        %v841 = vadd.f32 0.0, %v840
        %v842 = vpop.f32.mrb[0].mxu0
        %843 = vmatprep.mubr.bf16.mxu0 0
        %844 = vmatmul.mubr.bf16.gmra.mrb[0].mxu0 %v453
        %v845 = vpop.f32.mrb[0].mxu0
        %v846 = vadd.f32 0.0, %v845
        %v847 = vpop.f32.mrb[0].mxu0
        %v848 = vpop.f32.mrb[0].mxu0
        %v849 = vadd.f32 0.0, %v848
        %v850 = vpop.f32.mrb[0].mxu0
        %851 = vmatprep.mubr.bf16.mxu0 0
        %852 = vmatmul.mubr.bf16.gmra.mrb[0].mxu0 %v456
        %v853 = vpop.f32.mrb[0].mxu0
        %v854 = vadd.f32 0.0, %v853
        %v855 = vpop.f32.mrb[0].mxu0
        %v856 = vpop.f32.mrb[0].mxu0
        %v857 = vadd.f32 0.0, %v856
        %v858 = vpop.f32.mrb[0].mxu0
        %859 = vmatprep.mubr.bf16.mxu0 0
        %860 = vmatmul.mubr.bf16.gmra.mrb[0].mxu0 %v459
        %v861 = vpop.f32.mrb[0].mxu0
        %v862 = vadd.f32 0.0, %v861
        %v863 = vpop.f32.mrb[0].mxu0
        %v864 = vpop.f32.mrb[0].mxu0
        %v865 = vadd.f32 0.0, %v864
        %v866 = vpop.f32.mrb[0].mxu0
        %867 = vmatprep.mubr.bf16.mxu0 0
        %868 = vmatmul.mubr.bf16.gmra.mrb[0].mxu0 %v462
        %v869 = vpop.f32.mrb[0].mxu0
        %v870 = vadd.f32 0.0, %v869
        %v871 = vpop.f32.mrb[0].mxu0
        %v872 = vpop.f32.mrb[0].mxu0
        %v873 = vadd.f32 0.0, %v872
        %v874 = vpop.f32.mrb[0].mxu0
        %875 = vmatprep.mubr.bf16.mxu0 0
        %876 = vmatmul.mubr.bf16.gmra.mrb[0].mxu0 %v465
        %v877 = vpop.f32.mrb[0].mxu0
        %v878 = vadd.f32 0.0, %v877
        %v879 = vpop.f32.mrb[0].mxu0
        %v880 = vpop.f32.mrb[0].mxu0
        %v881 = vadd.f32 0.0, %v880
        %v882 = vpop.f32.mrb[0].mxu0
        %883 = vmatprep.mubr.bf16.mxu0 0
        %884 = vmatmul.mubr.bf16.gmra.mrb[0].mxu0 %v468
        %v885 = vpop.f32.mrb[0].mxu0
        %v886 = vadd.f32 0.0, %v885
        %v887 = vpop.f32.mrb[0].mxu0
        %v888 = vpop.f32.mrb[0].mxu0
        %v889 = vadd.f32 0.0, %v888
        %v890 = vpop.f32.mrb[0].mxu0
        %891 = vmatprep.mubr.bf16.mxu0 0
        %892 = vmatmul.mubr.bf16.gmra.mrb[0].mxu0 %v471
        %v893 = vpop.f32.mrb[0].mxu0
        %v894 = vadd.f32 0.0, %v893
        %v895 = vpop.f32.mrb[0].mxu0
        %v896 = vpop.f32.mrb[0].mxu0
        %v897 = vadd.f32 0.0, %v896
        %v898 = vpop.f32.mrb[0].mxu0
        %899 = vmatprep.mubr.bf16.mxu0 0
        %900 = vmatmul.mubr.bf16.gmra.mrb[0].mxu0 %v474
        %v901 = vpop.f32.mrb[0].mxu0
        %v902 = vadd.f32 0.0, %v901
        %v903 = vpop.f32.mrb[0].mxu0
        %v904 = vpop.f32.mrb[0].mxu0
        %v905 = vadd.f32 0.0, %v904
        %v906 = vpop.f32.mrb[0].mxu0
        %907 = vmatprep.mubr.bf16.mxu0 0
        %908 = vmatmul.mubr.bf16.gmra.mrb[0].mxu0 %v477
        %v909 = vpop.f32.mrb[0].mxu0
        %v910 = vadd.f32 0.0, %v909
        %v911 = vpop.f32.mrb[0].mxu0
        %v912 = vpop.f32.mrb[0].mxu0
        %v913 = vadd.f32 0.0, %v912
        %v914 = vpop.f32.mrb[0].mxu0
        %915 = vmatprep.mubr.bf16.mxu0 0
        %916 = vmatmul.mubr.bf16.gmra.mrb[0].mxu0 %v480
        %v917 = vpop.f32.mrb[0].mxu0
        %v918 = vadd.f32 0.0, %v917
        %v919 = vpop.f32.mrb[0].mxu0
        %v920 = vpop.f32.mrb[0].mxu0
        %v921 = vadd.f32 0.0, %v920
        %v922 = vpop.f32.mrb[0].mxu0
        %923 = vmatprep.mubr.bf16.mxu0 0
        %924 = vmatmul.mubr.bf16.gmra.mrb[0].mxu0 %v483
        %v925 = vpop.f32.mrb[0].mxu0
        %v926 = vadd.f32 0.0, %v925
        %v927 = vpop.f32.mrb[0].mxu0
        %v928 = vpop.f32.mrb[0].mxu0
        %v929 = vadd.f32 0.0, %v928
        %v930 = vpop.f32.mrb[0].mxu0
        %931 = vmatprep.mubr.bf16.mxu0 0
        %932 = vmatmul.mubr.bf16.gmra.mrb[0].mxu0 %v486
        %v933 = vpop.f32.mrb[0].mxu0
        %v934 = vadd.f32 0.0, %v933
        %v935 = vpop.f32.mrb[0].mxu0
        %v936 = vpop.f32.mrb[0].mxu0
        %v937 = vadd.f32 0.0, %v936
        %v938 = vpop.f32.mrb[0].mxu0
        %939 = vmatprep.mubr.bf16.mxu0 0
        %940 = vmatmul.mubr.bf16.gmra.mrb[0].mxu0 %v489
        %v941 = vpop.f32.mrb[0].mxu0
        %v942 = vadd.f32 0.0, %v941
        %v943 = vpop.f32.mrb[0].mxu0
        %v944 = vpop.f32.mrb[0].mxu0
        %v945 = vadd.f32 0.0, %v944
        %v946 = vpop.f32.mrb[0].mxu0
        %947 = vmatprep.mubr.bf16.mxu0 0
        %948 = vmatmul.mubr.bf16.gmra.mrb[0].mxu0 %v492
        %v949 = vpop.f32.mrb[0].mxu0
        %v950 = vadd.f32 0.0, %v949
        %v951 = vpop.f32.mrb[0].mxu0
        %v952 = vpop.f32.mrb[0].mxu0
        %v953 = vadd.f32 0.0, %v952
        %v954 = vpop.f32.mrb[0].mxu0
        %955 = vmatprep.mubr.bf16.mxu0 0
        %956 = vmatmul.mubr.bf16.gmra.mrb[0].mxu0 %v495
        %v957 = vpop.f32.mrb[0].mxu0
        %v958 = vadd.f32 0.0, %v957
        %v959 = vpop.f32.mrb[0].mxu0
        %v960 = vpop.f32.mrb[0].mxu0
        %v961 = vadd.f32 0.0, %v960
        %v962 = vpop.f32.mrb[0].mxu0
        %963 = vmatprep.mubr.bf16.mxu0 0
        %964 = vmatmul.mubr.bf16.gmra.mrb[0].mxu0 %v498
        %v965 = vpop.f32.mrb[0].mxu0
        %v966 = vadd.f32 0.0, %v965
        %v967 = vpop.f32.mrb[0].mxu0
        %v968 = vpop.f32.mrb[0].mxu0
        %v969 = vadd.f32 0.0, %v968
        %v970 = vpop.f32.mrb[0].mxu0
        %971 = vmatprep.mubr.bf16.mxu0 0
        %972 = vmatmul.mubr.bf16.gmra.mrb[0].mxu0 %v501
        %v973 = vpop.f32.mrb[0].mxu0
        %v974 = vadd.f32 0.0, %v973
        %v975 = vpop.f32.mrb[0].mxu0
        %v976 = vpop.f32.mrb[0].mxu0
        %v977 = vadd.f32 0.0, %v976
        %v978 = vpop.f32.mrb[0].mxu0
        %979 = vmatprep.mubr.bf16.mxu0 0
        %980 = vmatmul.mubr.bf16.gmra.mrb[0].mxu0 %v504
        %v981 = vpop.f32.mrb[0].mxu0
        %v982 = vadd.f32 0.0, %v981
        %v983 = vpop.f32.mrb[0].mxu0
        %v984 = vpop.f32.mrb[0].mxu0
        %v985 = vadd.f32 0.0, %v984
        %v986 = vpop.f32.mrb[0].mxu0
        %987 = vdwg.mxu0
        %vm1036 = vcmask 1046528
        %v1037 = vrot.slane %v543, 1
        %v1038 = vrot.slane %v547, 1
        %v1039 = vsel %vm1036, %v1037, %v1038
        %v1040 = vrot.slane %v552, 1
        %v1041 = vsel %vm1036, %v1038, %v1040
        %v1042 = vrot.slane %v556, 1
        %v1043 = vrot.slane %v562, 1
        %v1044 = vsel %vm1036, %v1042, %v1043
        %v1045 = vrot.slane %v565, 1
        %v1046 = vsel %vm1036, %v1043, %v1045
        %v1047 = vrot.slane %v571, 1
        %v1048 = vrot.slane %v575, 1
        %v1049 = vsel %vm1036, %v1047, %v1048
        %v1050 = vrot.slane %v580, 1
        %v1051 = vsel %vm1036, %v1048, %v1050
        %v1052 = vrot.slane %v584, 1
        %v1053 = vrot.slane %v590, 1
        %v1054 = vsel %vm1036, %v1052, %v1053
        %v1055 = vrot.slane %v593, 1
        %v1056 = vsel %vm1036, %v1053, %v1055
        %v1057 = vrot.slane %v599, 1
        %v1058 = vrot.slane %v603, 1
        %v1059 = vsel %vm1036, %v1057, %v1058
        %v1060 = vrot.slane %v608, 1
        %v1061 = vsel %vm1036, %v1058, %v1060
        %v1062 = vrot.slane %v612, 1
        %v1063 = vrot.slane %v618, 1
        %v1064 = vsel %vm1036, %v1062, %v1063
        %v1065 = vrot.slane %v621, 1
        %v1066 = vsel %vm1036, %v1063, %v1065
        %v1067 = vrot.slane %v627, 1
        %v1068 = vrot.slane %v631, 1
        %v1069 = vsel %vm1036, %v1067, %v1068
        %v1070 = vrot.slane %v636, 1
        %v1071 = vsel %vm1036, %v1068, %v1070
        %v1072 = vrot.slane %v640, 1
        %v1073 = vrot.slane %v646, 1
        %v1074 = vsel %vm1036, %v1072, %v1073
        %v1075 = vrot.slane %v649, 1
        %v1076 = vsel %vm1036, %v1073, %v1075
        %v1077 = vrot.slane %v655, 1
        %v1078 = vrot.slane %v659, 1
        %v1079 = vsel %vm1036, %v1077, %v1078
        %v1080 = vrot.slane %v664, 1
        %v1081 = vsel %vm1036, %v1078, %v1080
        %v1082 = vrot.slane %v668, 1
        %v1083 = vrot.slane %v674, 1
        %v1084 = vsel %vm1036, %v1082, %v1083
        %v1085 = vrot.slane %v677, 1
        %v1086 = vsel %vm1036, %v1083, %v1085
        %v1087 = vrot.slane %v683, 1
        %v1088 = vrot.slane %v687, 1
        %v1089 = vsel %vm1036, %v1087, %v1088
        %v1090 = vrot.slane %v692, 1
        %v1091 = vsel %vm1036, %v1088, %v1090
        %v1092 = vrot.slane %v696, 1
        %v1093 = vrot.slane %v702, 1
        %v1094 = vsel %vm1036, %v1092, %v1093
        %v1095 = vrot.slane %v705, 1
        %v1096 = vsel %vm1036, %v1093, %v1095
        %v1097 = vrot.slane %v711, 1
        %v1098 = vrot.slane %v715, 1
        %v1099 = vsel %vm1036, %v1097, %v1098
        %v1100 = vrot.slane %v720, 1
        %v1101 = vsel %vm1036, %v1098, %v1100
        %v1102 = vrot.slane %v724, 1
        %v1103 = vrot.slane %v730, 1
        %v1104 = vsel %vm1036, %v1102, %v1103
        %v1105 = vrot.slane %v733, 1
        %v1106 = vsel %vm1036, %v1103, %v1105
        %v1107 = vrot.slane %v739, 1
        %v1108 = vrot.slane %v743, 1
        %v1109 = vsel %vm1036, %v1107, %v1108
        %v1110 = vrot.slane %v748, 1
        %v1111 = vsel %vm1036, %v1108, %v1110
        %v1112 = vrot.slane %v752, 1
        %v1113 = vrot.slane %v758, 1
        %v1114 = vsel %vm1036, %v1112, %v1113
        %v1115 = vrot.slane %v761, 1
        %v1116 = vsel %vm1036, %v1113, %v1115
        %v1149 = vadd.f32 %v541, %v1039
        %v1150 = vadd.f32 %v545, %v1041
        %v1151 = vadd.f32 %v554, %v1044
        %v1152 = vadd.f32 %v560, %v1046
        %v1153 = vadd.f32 %v569, %v1049
        %v1154 = vadd.f32 %v573, %v1051
        %v1155 = vadd.f32 %v582, %v1054
        %v1156 = vadd.f32 %v588, %v1056
        %v1157 = vadd.f32 %v597, %v1059
        %v1158 = vadd.f32 %v601, %v1061
        %v1159 = vadd.f32 %v610, %v1064
        %v1160 = vadd.f32 %v616, %v1066
        %v1161 = vadd.f32 %v625, %v1069
        %v1162 = vadd.f32 %v629, %v1071
        %v1163 = vadd.f32 %v638, %v1074
        %v1164 = vadd.f32 %v644, %v1076
        %v1165 = vadd.f32 %v653, %v1079
        %v1166 = vadd.f32 %v657, %v1081
        %v1167 = vadd.f32 %v666, %v1084
        %v1168 = vadd.f32 %v672, %v1086
        %v1169 = vadd.f32 %v681, %v1089
        %v1170 = vadd.f32 %v685, %v1091
        %v1171 = vadd.f32 %v694, %v1094
        %v1172 = vadd.f32 %v700, %v1096
        %v1173 = vadd.f32 %v709, %v1099
        %v1174 = vadd.f32 %v713, %v1101
        %v1175 = vadd.f32 %v722, %v1104
        %v1176 = vadd.f32 %v728, %v1106
        %v1177 = vadd.f32 %v737, %v1109
        %v1178 = vadd.f32 %v741, %v1111
        %v1179 = vadd.f32 %v750, %v1114
        %v1180 = vadd.f32 %v756, %v1116
        %vm1229 = vcmask 1045504
        %v1230 = vrot.slane %v798, 2
        %v1231 = vrot.slane %v801, 2
        %v1232 = vsel %vm1229, %v1230, %v1231
        %v1233 = vrot.slane %v806, 2
        %v1234 = vsel %vm1229, %v1231, %v1233
        %v1235 = vrot.slane %v809, 2
        %v1236 = vrot.slane %v814, 2
        %v1237 = vsel %vm1229, %v1235, %v1236
        %v1238 = vrot.slane %v817, 2
        %v1239 = vsel %vm1229, %v1236, %v1238
        %v1240 = vrot.slane %v822, 2
        %v1241 = vrot.slane %v825, 2
        %v1242 = vsel %vm1229, %v1240, %v1241
        %v1243 = vrot.slane %v830, 2
        %v1244 = vsel %vm1229, %v1241, %v1243
        %v1245 = vrot.slane %v833, 2
        %v1246 = vrot.slane %v838, 2
        %v1247 = vsel %vm1229, %v1245, %v1246
        %v1248 = vrot.slane %v841, 2
        %v1249 = vsel %vm1229, %v1246, %v1248
        %v1250 = vrot.slane %v846, 2
        %v1251 = vrot.slane %v849, 2
        %v1252 = vsel %vm1229, %v1250, %v1251
        %v1253 = vrot.slane %v854, 2
        %v1254 = vsel %vm1229, %v1251, %v1253
        %v1255 = vrot.slane %v857, 2
        %v1256 = vrot.slane %v862, 2
        %v1257 = vsel %vm1229, %v1255, %v1256
        %v1258 = vrot.slane %v865, 2
        %v1259 = vsel %vm1229, %v1256, %v1258
        %v1260 = vrot.slane %v870, 2
        %v1261 = vrot.slane %v873, 2
        %v1262 = vsel %vm1229, %v1260, %v1261
        %v1263 = vrot.slane %v878, 2
        %v1264 = vsel %vm1229, %v1261, %v1263
        %v1265 = vrot.slane %v881, 2
        %v1266 = vrot.slane %v886, 2
        %v1267 = vsel %vm1229, %v1265, %v1266
        %v1268 = vrot.slane %v889, 2
        %v1269 = vsel %vm1229, %v1266, %v1268
        %v1270 = vrot.slane %v894, 2
        %v1271 = vrot.slane %v897, 2
        %v1272 = vsel %vm1229, %v1270, %v1271
        %v1273 = vrot.slane %v902, 2
        %v1274 = vsel %vm1229, %v1271, %v1273
        %v1275 = vrot.slane %v905, 2
        %v1276 = vrot.slane %v910, 2
        %v1277 = vsel %vm1229, %v1275, %v1276
        %v1278 = vrot.slane %v913, 2
        %v1279 = vsel %vm1229, %v1276, %v1278
        %v1280 = vrot.slane %v918, 2
        %v1281 = vrot.slane %v921, 2
        %v1282 = vsel %vm1229, %v1280, %v1281
        %v1283 = vrot.slane %v926, 2
        %v1284 = vsel %vm1229, %v1281, %v1283
        %v1285 = vrot.slane %v929, 2
        %v1286 = vrot.slane %v934, 2
        %v1287 = vsel %vm1229, %v1285, %v1286
        %v1288 = vrot.slane %v937, 2
        %v1289 = vsel %vm1229, %v1286, %v1288
        %v1290 = vrot.slane %v942, 2
        %v1291 = vrot.slane %v945, 2
        %v1292 = vsel %vm1229, %v1290, %v1291
        %v1293 = vrot.slane %v950, 2
        %v1294 = vsel %vm1229, %v1291, %v1293
        %v1295 = vrot.slane %v953, 2
        %v1296 = vrot.slane %v958, 2
        %v1297 = vsel %vm1229, %v1295, %v1296
        %v1298 = vrot.slane %v961, 2
        %v1299 = vsel %vm1229, %v1296, %v1298
        %v1300 = vrot.slane %v966, 2
        %v1301 = vrot.slane %v969, 2
        %v1302 = vsel %vm1229, %v1300, %v1301
        %v1303 = vrot.slane %v974, 2
        %v1304 = vsel %vm1229, %v1301, %v1303
        %v1305 = vrot.slane %v977, 2
        %v1306 = vrot.slane %v982, 2
        %v1307 = vsel %vm1229, %v1305, %v1306
        %v1308 = vrot.slane %v985, 2
        %v1309 = vsel %vm1229, %v1306, %v1308
        %v1342 = vadd.f32 %v1149, %v1232
        %v1343 = vadd.f32 %v1150, %v1234
        %v1344 = vadd.f32 %v1151, %v1237
        %v1345 = vadd.f32 %v1152, %v1239
        %v1346 = vadd.f32 %v1153, %v1242
        %v1347 = vadd.f32 %v1154, %v1244
        %v1348 = vadd.f32 %v1155, %v1247
        %v1349 = vadd.f32 %v1156, %v1249
        %v1350 = vadd.f32 %v1157, %v1252
        %v1351 = vadd.f32 %v1158, %v1254
        %v1352 = vadd.f32 %v1159, %v1257
        %v1353 = vadd.f32 %v1160, %v1259
        %v1354 = vadd.f32 %v1161, %v1262
        %v1355 = vadd.f32 %v1162, %v1264
        %v1356 = vadd.f32 %v1163, %v1267
        %v1357 = vadd.f32 %v1164, %v1269
        %v1358 = vadd.f32 %v1165, %v1272
        %v1359 = vadd.f32 %v1166, %v1274
        %v1360 = vadd.f32 %v1167, %v1277
        %v1361 = vadd.f32 %v1168, %v1279
        %v1362 = vadd.f32 %v1169, %v1282
        %v1363 = vadd.f32 %v1170, %v1284
        %v1364 = vadd.f32 %v1171, %v1287
        %v1365 = vadd.f32 %v1172, %v1289
        %v1366 = vadd.f32 %v1173, %v1292
        %v1367 = vadd.f32 %v1174, %v1294
        %v1368 = vadd.f32 %v1175, %v1297
        %v1369 = vadd.f32 %v1176, %v1299
        %v1370 = vadd.f32 %v1177, %v1302
        %v1371 = vadd.f32 %v1178, %v1304
        %v1372 = vadd.f32 %v1179, %v1307
        %v1373 = vadd.f32 %v1180, %v1309
        %v1374 = vld [vmem:[%s221] sm:$0xff]
        %v1375 = vld [vmem:[%s221 + $0x8] sm:$0xff]
        %v1376 = vld [vmem:[%s221 + $0x10] sm:$0xff]
        %v1377 = vld [vmem:[%s221 + $0x18] sm:$0xff]
        %v1378 = vld [vmem:[%s221 + $0x20] sm:$0xff]
        %v1379 = vld [vmem:[%s221 + $0x28] sm:$0xff]
        %v1380 = vld [vmem:[%s221 + $0x30] sm:$0xff]
        %v1381 = vld [vmem:[%s221 + $0x38] sm:$0xff]
        %v1382 = vld [vmem:[%s221 + $0x40] sm:$0xff]
        %v1383 = vld [vmem:[%s221 + $0x48] sm:$0xff]
        %v1384 = vld [vmem:[%s221 + $0x50] sm:$0xff]
        %v1385 = vld [vmem:[%s221 + $0x58] sm:$0xff]
        %v1386 = vld [vmem:[%s221 + $0x60] sm:$0xff]
        %v1387 = vld [vmem:[%s221 + $0x68] sm:$0xff]
        %v1388 = vld [vmem:[%s221 + $0x70] sm:$0xff]
        %v1389 = vld [vmem:[%s221 + $0x78] sm:$0xff]
        %v1390 = vld [vmem:[%s221 + $0x80] sm:$0xff]
        %v1391 = vld [vmem:[%s221 + $0x88] sm:$0xff]
        %v1392 = vld [vmem:[%s221 + $0x90] sm:$0xff]
        %v1393 = vld [vmem:[%s221 + $0x98] sm:$0xff]
        %v1394 = vld [vmem:[%s221 + $0xa0] sm:$0xff]
        %v1395 = vld [vmem:[%s221 + $0xa8] sm:$0xff]
        %v1396 = vld [vmem:[%s221 + $0xb0] sm:$0xff]
        %v1397 = vld [vmem:[%s221 + $0xb8] sm:$0xff]
        %v1398 = vld [vmem:[%s221 + $0xc0] sm:$0xff]
        %v1399 = vld [vmem:[%s221 + $0xc8] sm:$0xff]
        %v1400 = vld [vmem:[%s221 + $0xd0] sm:$0xff]
        %v1401 = vld [vmem:[%s221 + $0xd8] sm:$0xff]
        %v1402 = vld [vmem:[%s221 + $0xe0] sm:$0xff]
        %v1403 = vld [vmem:[%s221 + $0xe8] sm:$0xff]
        %v1404 = vld [vmem:[%s221 + $0xf0] sm:$0xff]
        %v1405 = vld [vmem:[%s221 + $0xf8] sm:$0xff]
        %1407 = vset.pattern.permute.xlu0 0
        %1408 = vperm.xlu0 %1407, %v1374
        %v1409 = vpop.permute.xlu0 %1408
        %1412 = vset.pattern.permute.xlu0 0
        %1413 = vperm.xlu0 %1412, %v1375
        %v1414 = vpop.permute.xlu0 %1413
        %1417 = vset.pattern.permute.xlu0 0
        %1418 = vperm.xlu0 %1417, %v1376
        %v1419 = vpop.permute.xlu0 %1418
        %1422 = vset.pattern.permute.xlu0 0
        %1423 = vperm.xlu0 %1422, %v1377
        %v1424 = vpop.permute.xlu0 %1423
        %1427 = vset.pattern.permute.xlu0 0
        %1428 = vperm.xlu0 %1427, %v1378
        %v1429 = vpop.permute.xlu0 %1428
        %1432 = vset.pattern.permute.xlu0 0
        %1433 = vperm.xlu0 %1432, %v1379
        %v1434 = vpop.permute.xlu0 %1433
        %1437 = vset.pattern.permute.xlu0 0
        %1438 = vperm.xlu0 %1437, %v1380
        %v1439 = vpop.permute.xlu0 %1438
        %1442 = vset.pattern.permute.xlu0 0
        %1443 = vperm.xlu0 %1442, %v1381
        %v1444 = vpop.permute.xlu0 %1443
        %1447 = vset.pattern.permute.xlu0 0
        %1448 = vperm.xlu0 %1447, %v1382
        %v1449 = vpop.permute.xlu0 %1448
        %1452 = vset.pattern.permute.xlu0 0
        %1453 = vperm.xlu0 %1452, %v1383
        %v1454 = vpop.permute.xlu0 %1453
        %1457 = vset.pattern.permute.xlu0 0
        %1458 = vperm.xlu0 %1457, %v1384
        %v1459 = vpop.permute.xlu0 %1458
        %1462 = vset.pattern.permute.xlu0 0
        %1463 = vperm.xlu0 %1462, %v1385
        %v1464 = vpop.permute.xlu0 %1463
        %1467 = vset.pattern.permute.xlu0 0
        %1468 = vperm.xlu0 %1467, %v1386
        %v1469 = vpop.permute.xlu0 %1468
        %1472 = vset.pattern.permute.xlu0 0
        %1473 = vperm.xlu0 %1472, %v1387
        %v1474 = vpop.permute.xlu0 %1473
        %1477 = vset.pattern.permute.xlu0 0
        %1478 = vperm.xlu0 %1477, %v1388
        %v1479 = vpop.permute.xlu0 %1478
        %1482 = vset.pattern.permute.xlu0 0
        %1483 = vperm.xlu0 %1482, %v1389
        %v1484 = vpop.permute.xlu0 %1483
        %1487 = vset.pattern.permute.xlu0 0
        %1488 = vperm.xlu0 %1487, %v1390
        %v1489 = vpop.permute.xlu0 %1488
        %1492 = vset.pattern.permute.xlu0 0
        %1493 = vperm.xlu0 %1492, %v1391
        %v1494 = vpop.permute.xlu0 %1493
        %1497 = vset.pattern.permute.xlu0 0
        %1498 = vperm.xlu0 %1497, %v1392
        %v1499 = vpop.permute.xlu0 %1498
        %1502 = vset.pattern.permute.xlu0 0
        %1503 = vperm.xlu0 %1502, %v1393
        %v1504 = vpop.permute.xlu0 %1503
        %1507 = vset.pattern.permute.xlu0 0
        %1508 = vperm.xlu0 %1507, %v1394
        %v1509 = vpop.permute.xlu0 %1508
        %1512 = vset.pattern.permute.xlu0 0
        %1513 = vperm.xlu0 %1512, %v1395
        %v1514 = vpop.permute.xlu0 %1513
        %1517 = vset.pattern.permute.xlu0 0
        %1518 = vperm.xlu0 %1517, %v1396
        %v1519 = vpop.permute.xlu0 %1518
        %1522 = vset.pattern.permute.xlu0 0
        %1523 = vperm.xlu0 %1522, %v1397
        %v1524 = vpop.permute.xlu0 %1523
        %1527 = vset.pattern.permute.xlu0 0
        %1528 = vperm.xlu0 %1527, %v1398
        %v1529 = vpop.permute.xlu0 %1528
        %1532 = vset.pattern.permute.xlu0 0
        %1533 = vperm.xlu0 %1532, %v1399
        %v1534 = vpop.permute.xlu0 %1533
        %1537 = vset.pattern.permute.xlu0 0
        %1538 = vperm.xlu0 %1537, %v1400
        %v1539 = vpop.permute.xlu0 %1538
        %1542 = vset.pattern.permute.xlu0 0
        %1543 = vperm.xlu0 %1542, %v1401
        %v1544 = vpop.permute.xlu0 %1543
        %1547 = vset.pattern.permute.xlu0 0
        %1548 = vperm.xlu0 %1547, %v1402
        %v1549 = vpop.permute.xlu0 %1548
        %1552 = vset.pattern.permute.xlu0 0
        %1553 = vperm.xlu0 %1552, %v1403
        %v1554 = vpop.permute.xlu0 %1553
        %1557 = vset.pattern.permute.xlu0 0
        %1558 = vperm.xlu0 %1557, %v1404
        %v1559 = vpop.permute.xlu0 %1558
        %1562 = vset.pattern.permute.xlu0 0
        %1563 = vperm.xlu0 %1562, %v1405
        %v1564 = vpop.permute.xlu0 %1563
        %v1566 = vadd.f32 %v1342, %v1409
        %v1567 = vadd.f32 %v1343, %v1414
        %v1568 = vadd.f32 %v1344, %v1419
        %v1569 = vadd.f32 %v1345, %v1424
        %v1570 = vadd.f32 %v1346, %v1429
        %v1571 = vadd.f32 %v1347, %v1434
        %v1572 = vadd.f32 %v1348, %v1439
        %v1573 = vadd.f32 %v1349, %v1444
        %v1574 = vadd.f32 %v1350, %v1449
        %v1575 = vadd.f32 %v1351, %v1454
        %v1576 = vadd.f32 %v1352, %v1459
        %v1577 = vadd.f32 %v1353, %v1464
        %v1578 = vadd.f32 %v1354, %v1469
        %v1579 = vadd.f32 %v1355, %v1474
        %v1580 = vadd.f32 %v1356, %v1479
        %v1581 = vadd.f32 %v1357, %v1484
        %v1582 = vadd.f32 %v1358, %v1489
        %v1583 = vadd.f32 %v1359, %v1494
        %v1584 = vadd.f32 %v1360, %v1499
        %v1585 = vadd.f32 %v1361, %v1504
        %v1586 = vadd.f32 %v1362, %v1509
        %v1587 = vadd.f32 %v1363, %v1514
        %v1588 = vadd.f32 %v1364, %v1519
        %v1589 = vadd.f32 %v1365, %v1524
        %v1590 = vadd.f32 %v1366, %v1529
        %v1591 = vadd.f32 %v1367, %v1534
        %v1592 = vadd.f32 %v1368, %v1539
        %v1593 = vadd.f32 %v1369, %v1544
        %v1594 = vadd.f32 %v1370, %v1549
        %v1595 = vadd.f32 %v1371, %v1554
        %v1596 = vadd.f32 %v1372, %v1559
        %v1597 = vadd.f32 %v1373, %v1564
        %v1598 = vmax.f32 %v1566, %v1567
        %v1599 = vrot.slane %v1598, 4
        %v1600 = vmax.f32 %v1598, %v1599
        %v1601 = vrot.slane %v1600, 2
        %v1602 = vmax.f32 %v1600, %v1601
        %v1603 = vrot.slane %v1602, 1
        %v1604 = vmax.f32 %v1602, %v1603
        %v1605 = vmax.f32 %v1568, %v1569
        %v1606 = vrot.slane %v1605, 4
        %v1607 = vmax.f32 %v1605, %v1606
        %v1608 = vrot.slane %v1607, 2
        %v1609 = vmax.f32 %v1607, %v1608
        %v1610 = vrot.slane %v1609, 1
        %v1611 = vmax.f32 %v1609, %v1610
        %v1612 = vmax.f32 %v1570, %v1571
        %v1613 = vrot.slane %v1612, 4
        %v1614 = vmax.f32 %v1612, %v1613
        %v1615 = vrot.slane %v1614, 2
        %v1616 = vmax.f32 %v1614, %v1615
        %v1617 = vrot.slane %v1616, 1
        %v1618 = vmax.f32 %v1616, %v1617
        %v1619 = vmax.f32 %v1572, %v1573
        %v1620 = vrot.slane %v1619, 4
        %v1621 = vmax.f32 %v1619, %v1620
        %v1622 = vrot.slane %v1621, 2
        %v1623 = vmax.f32 %v1621, %v1622
        %v1624 = vrot.slane %v1623, 1
        %v1625 = vmax.f32 %v1623, %v1624
        %v1626 = vmax.f32 %v1574, %v1575
        %v1627 = vrot.slane %v1626, 4
        %v1628 = vmax.f32 %v1626, %v1627
        %v1629 = vrot.slane %v1628, 2
        %v1630 = vmax.f32 %v1628, %v1629
        %v1631 = vrot.slane %v1630, 1
        %v1632 = vmax.f32 %v1630, %v1631
        %v1633 = vmax.f32 %v1576, %v1577
        %v1634 = vrot.slane %v1633, 4
        %v1635 = vmax.f32 %v1633, %v1634
        %v1636 = vrot.slane %v1635, 2
        %v1637 = vmax.f32 %v1635, %v1636
        %v1638 = vrot.slane %v1637, 1
        %v1639 = vmax.f32 %v1637, %v1638
        %v1640 = vmax.f32 %v1578, %v1579
        %v1641 = vrot.slane %v1640, 4
        %v1642 = vmax.f32 %v1640, %v1641
        %v1643 = vrot.slane %v1642, 2
        %v1644 = vmax.f32 %v1642, %v1643
        %v1645 = vrot.slane %v1644, 1
        %v1646 = vmax.f32 %v1644, %v1645
        %v1647 = vmax.f32 %v1580, %v1581
        %v1648 = vrot.slane %v1647, 4
        %v1649 = vmax.f32 %v1647, %v1648
        %v1650 = vrot.slane %v1649, 2
        %v1651 = vmax.f32 %v1649, %v1650
        %v1652 = vrot.slane %v1651, 1
        %v1653 = vmax.f32 %v1651, %v1652
        %v1654 = vmax.f32 %v1582, %v1583
        %v1655 = vrot.slane %v1654, 4
        %v1656 = vmax.f32 %v1654, %v1655
        %v1657 = vrot.slane %v1656, 2
        %v1658 = vmax.f32 %v1656, %v1657
        %v1659 = vrot.slane %v1658, 1
        %v1660 = vmax.f32 %v1658, %v1659
        %v1661 = vmax.f32 %v1584, %v1585
        %v1662 = vrot.slane %v1661, 4
        %v1663 = vmax.f32 %v1661, %v1662
        %v1664 = vrot.slane %v1663, 2
        %v1665 = vmax.f32 %v1663, %v1664
        %v1666 = vrot.slane %v1665, 1
        %v1667 = vmax.f32 %v1665, %v1666
        %v1668 = vmax.f32 %v1586, %v1587
        %v1669 = vrot.slane %v1668, 4
        %v1670 = vmax.f32 %v1668, %v1669
        %v1671 = vrot.slane %v1670, 2
        %v1672 = vmax.f32 %v1670, %v1671
        %v1673 = vrot.slane %v1672, 1
        %v1674 = vmax.f32 %v1672, %v1673
        %v1675 = vmax.f32 %v1588, %v1589
        %v1676 = vrot.slane %v1675, 4
        %v1677 = vmax.f32 %v1675, %v1676
        %v1678 = vrot.slane %v1677, 2
        %v1679 = vmax.f32 %v1677, %v1678
        %v1680 = vrot.slane %v1679, 1
        %v1681 = vmax.f32 %v1679, %v1680
        %v1682 = vmax.f32 %v1590, %v1591
        %v1683 = vrot.slane %v1682, 4
        %v1684 = vmax.f32 %v1682, %v1683
        %v1685 = vrot.slane %v1684, 2
        %v1686 = vmax.f32 %v1684, %v1685
        %v1687 = vrot.slane %v1686, 1
        %v1688 = vmax.f32 %v1686, %v1687
        %v1689 = vmax.f32 %v1592, %v1593
        %v1690 = vrot.slane %v1689, 4
        %v1691 = vmax.f32 %v1689, %v1690
        %v1692 = vrot.slane %v1691, 2
        %v1693 = vmax.f32 %v1691, %v1692
        %v1694 = vrot.slane %v1693, 1
        %v1695 = vmax.f32 %v1693, %v1694
        %v1696 = vmax.f32 %v1594, %v1595
        %v1697 = vrot.slane %v1696, 4
        %v1698 = vmax.f32 %v1696, %v1697
        %v1699 = vrot.slane %v1698, 2
        %v1700 = vmax.f32 %v1698, %v1699
        %v1701 = vrot.slane %v1700, 1
        %v1702 = vmax.f32 %v1700, %v1701
        %v1703 = vmax.f32 %v1596, %v1597
        %v1704 = vrot.slane %v1703, 4
        %v1705 = vmax.f32 %v1703, %v1704
        %v1706 = vrot.slane %v1705, 2
        %v1707 = vmax.f32 %v1705, %v1706
        %v1708 = vrot.slane %v1707, 1
        %v1709 = vmax.f32 %v1707, %v1708
        %1710 = vset.pattern.permute.xlu0 1
        %1711 = vperm.xlu0 %1710, %v1374
        %v1712 = vpop.permute.xlu0 %1711
        %1714 = vset.pattern.permute.xlu0 1
        %1715 = vperm.xlu0 %1714, %v1375
        %v1716 = vpop.permute.xlu0 %1715
        %1718 = vset.pattern.permute.xlu0 1
        %1719 = vperm.xlu0 %1718, %v1376
        %v1720 = vpop.permute.xlu0 %1719
        %1722 = vset.pattern.permute.xlu0 1
        %1723 = vperm.xlu0 %1722, %v1377
        %v1724 = vpop.permute.xlu0 %1723
        %1726 = vset.pattern.permute.xlu0 1
        %1727 = vperm.xlu0 %1726, %v1378
        %v1728 = vpop.permute.xlu0 %1727
        %1730 = vset.pattern.permute.xlu0 1
        %1731 = vperm.xlu0 %1730, %v1379
        %v1732 = vpop.permute.xlu0 %1731
        %1734 = vset.pattern.permute.xlu0 1
        %1735 = vperm.xlu0 %1734, %v1380
        %v1736 = vpop.permute.xlu0 %1735
        %1738 = vset.pattern.permute.xlu0 1
        %1739 = vperm.xlu0 %1738, %v1381
        %v1740 = vpop.permute.xlu0 %1739
        %1742 = vset.pattern.permute.xlu0 1
        %1743 = vperm.xlu0 %1742, %v1382
        %v1744 = vpop.permute.xlu0 %1743
        %1746 = vset.pattern.permute.xlu0 1
        %1747 = vperm.xlu0 %1746, %v1383
        %v1748 = vpop.permute.xlu0 %1747
        %1750 = vset.pattern.permute.xlu0 1
        %1751 = vperm.xlu0 %1750, %v1384
        %v1752 = vpop.permute.xlu0 %1751
        %1754 = vset.pattern.permute.xlu0 1
        %1755 = vperm.xlu0 %1754, %v1385
        %v1756 = vpop.permute.xlu0 %1755
        %1758 = vset.pattern.permute.xlu0 1
        %1759 = vperm.xlu0 %1758, %v1386
        %v1760 = vpop.permute.xlu0 %1759
        %1762 = vset.pattern.permute.xlu0 1
        %1763 = vperm.xlu0 %1762, %v1387
        %v1764 = vpop.permute.xlu0 %1763
        %1766 = vset.pattern.permute.xlu0 1
        %1767 = vperm.xlu0 %1766, %v1388
        %v1768 = vpop.permute.xlu0 %1767
        %1770 = vset.pattern.permute.xlu0 1
        %1771 = vperm.xlu0 %1770, %v1389
        %v1772 = vpop.permute.xlu0 %1771
        %1774 = vset.pattern.permute.xlu0 1
        %1775 = vperm.xlu0 %1774, %v1390
        %v1776 = vpop.permute.xlu0 %1775
        %1778 = vset.pattern.permute.xlu0 1
        %1779 = vperm.xlu0 %1778, %v1391
        %v1780 = vpop.permute.xlu0 %1779
        %1782 = vset.pattern.permute.xlu0 1
        %1783 = vperm.xlu0 %1782, %v1392
        %v1784 = vpop.permute.xlu0 %1783
        %1786 = vset.pattern.permute.xlu0 1
        %1787 = vperm.xlu0 %1786, %v1393
        %v1788 = vpop.permute.xlu0 %1787
        %1790 = vset.pattern.permute.xlu0 1
        %1791 = vperm.xlu0 %1790, %v1394
        %v1792 = vpop.permute.xlu0 %1791
        %1794 = vset.pattern.permute.xlu0 1
        %1795 = vperm.xlu0 %1794, %v1395
        %v1796 = vpop.permute.xlu0 %1795
        %1798 = vset.pattern.permute.xlu0 1
        %1799 = vperm.xlu0 %1798, %v1396
        %v1800 = vpop.permute.xlu0 %1799
        %1802 = vset.pattern.permute.xlu0 1
        %1803 = vperm.xlu0 %1802, %v1397
        %v1804 = vpop.permute.xlu0 %1803
        %1806 = vset.pattern.permute.xlu0 1
        %1807 = vperm.xlu0 %1806, %v1398
        %v1808 = vpop.permute.xlu0 %1807
        %1810 = vset.pattern.permute.xlu0 1
        %1811 = vperm.xlu0 %1810, %v1399
        %v1812 = vpop.permute.xlu0 %1811
        %1814 = vset.pattern.permute.xlu0 1
        %1815 = vperm.xlu0 %1814, %v1400
        %v1816 = vpop.permute.xlu0 %1815
        %1818 = vset.pattern.permute.xlu0 1
        %1819 = vperm.xlu0 %1818, %v1401
        %v1820 = vpop.permute.xlu0 %1819
        %1822 = vset.pattern.permute.xlu0 1
        %1823 = vperm.xlu0 %1822, %v1402
        %v1824 = vpop.permute.xlu0 %1823
        %1826 = vset.pattern.permute.xlu0 1
        %1827 = vperm.xlu0 %1826, %v1403
        %v1828 = vpop.permute.xlu0 %1827
        %1830 = vset.pattern.permute.xlu0 1
        %1831 = vperm.xlu0 %1830, %v1404
        %v1832 = vpop.permute.xlu0 %1831
        %1834 = vset.pattern.permute.xlu0 1
        %1835 = vperm.xlu0 %1834, %v1405
        %v1836 = vpop.permute.xlu0 %1835
        %v1838 = vadd.f32 %v1342, %v1712
        %v1839 = vadd.f32 %v1343, %v1716
        %v1840 = vadd.f32 %v1344, %v1720
        %v1841 = vadd.f32 %v1345, %v1724
        %v1842 = vadd.f32 %v1346, %v1728
        %v1843 = vadd.f32 %v1347, %v1732
        %v1844 = vadd.f32 %v1348, %v1736
        %v1845 = vadd.f32 %v1349, %v1740
        %v1846 = vadd.f32 %v1350, %v1744
        %v1847 = vadd.f32 %v1351, %v1748
        %v1848 = vadd.f32 %v1352, %v1752
        %v1849 = vadd.f32 %v1353, %v1756
        %v1850 = vadd.f32 %v1354, %v1760
        %v1851 = vadd.f32 %v1355, %v1764
        %v1852 = vadd.f32 %v1356, %v1768
        %v1853 = vadd.f32 %v1357, %v1772
        %v1854 = vadd.f32 %v1358, %v1776
        %v1855 = vadd.f32 %v1359, %v1780
        %v1856 = vadd.f32 %v1360, %v1784
        %v1857 = vadd.f32 %v1361, %v1788
        %v1858 = vadd.f32 %v1362, %v1792
        %v1859 = vadd.f32 %v1363, %v1796
        %v1860 = vadd.f32 %v1364, %v1800
        %v1861 = vadd.f32 %v1365, %v1804
        %v1862 = vadd.f32 %v1366, %v1808
        %v1863 = vadd.f32 %v1367, %v1812
        %v1864 = vadd.f32 %v1368, %v1816
        %v1865 = vadd.f32 %v1369, %v1820
        %v1866 = vadd.f32 %v1370, %v1824
        %v1867 = vadd.f32 %v1371, %v1828
        %v1868 = vadd.f32 %v1372, %v1832
        %v1869 = vadd.f32 %v1373, %v1836
        %v1870 = vmax.f32 %v1838, %v1839
        %v1871 = vrot.slane %v1870, 4
        %v1872 = vmax.f32 %v1870, %v1871
        %v1873 = vrot.slane %v1872, 2
        %v1874 = vmax.f32 %v1872, %v1873
        %v1875 = vrot.slane %v1874, 1
        %v1876 = vmax.f32 %v1874, %v1875
        %v1877 = vmax.f32 %v1840, %v1841
        %v1878 = vrot.slane %v1877, 4
        %v1879 = vmax.f32 %v1877, %v1878
        %v1880 = vrot.slane %v1879, 2
        %v1881 = vmax.f32 %v1879, %v1880
        %v1882 = vrot.slane %v1881, 1
        %v1883 = vmax.f32 %v1881, %v1882
        %v1884 = vmax.f32 %v1842, %v1843
        %v1885 = vrot.slane %v1884, 4
        %v1886 = vmax.f32 %v1884, %v1885
        %v1887 = vrot.slane %v1886, 2
        %v1888 = vmax.f32 %v1886, %v1887
        %v1889 = vrot.slane %v1888, 1
        %v1890 = vmax.f32 %v1888, %v1889
        %v1891 = vmax.f32 %v1844, %v1845
        %v1892 = vrot.slane %v1891, 4
        %v1893 = vmax.f32 %v1891, %v1892
        %v1894 = vrot.slane %v1893, 2
        %v1895 = vmax.f32 %v1893, %v1894
        %v1896 = vrot.slane %v1895, 1
        %v1897 = vmax.f32 %v1895, %v1896
        %v1898 = vmax.f32 %v1846, %v1847
        %v1899 = vrot.slane %v1898, 4
        %v1900 = vmax.f32 %v1898, %v1899
        %v1901 = vrot.slane %v1900, 2
        %v1902 = vmax.f32 %v1900, %v1901
        %v1903 = vrot.slane %v1902, 1
        %v1904 = vmax.f32 %v1902, %v1903
        %v1905 = vmax.f32 %v1848, %v1849
        %v1906 = vrot.slane %v1905, 4
        %v1907 = vmax.f32 %v1905, %v1906
        %v1908 = vrot.slane %v1907, 2
        %v1909 = vmax.f32 %v1907, %v1908
        %v1910 = vrot.slane %v1909, 1
        %v1911 = vmax.f32 %v1909, %v1910
        %v1912 = vmax.f32 %v1850, %v1851
        %v1913 = vrot.slane %v1912, 4
        %v1914 = vmax.f32 %v1912, %v1913
        %v1915 = vrot.slane %v1914, 2
        %v1916 = vmax.f32 %v1914, %v1915
        %v1917 = vrot.slane %v1916, 1
        %v1918 = vmax.f32 %v1916, %v1917
        %v1919 = vmax.f32 %v1852, %v1853
        %v1920 = vrot.slane %v1919, 4
        %v1921 = vmax.f32 %v1919, %v1920
        %v1922 = vrot.slane %v1921, 2
        %v1923 = vmax.f32 %v1921, %v1922
        %v1924 = vrot.slane %v1923, 1
        %v1925 = vmax.f32 %v1923, %v1924
        %v1926 = vmax.f32 %v1854, %v1855
        %v1927 = vrot.slane %v1926, 4
        %v1928 = vmax.f32 %v1926, %v1927
        %v1929 = vrot.slane %v1928, 2
        %v1930 = vmax.f32 %v1928, %v1929
        %v1931 = vrot.slane %v1930, 1
        %v1932 = vmax.f32 %v1930, %v1931
        %v1933 = vmax.f32 %v1856, %v1857
        %v1934 = vrot.slane %v1933, 4
        %v1935 = vmax.f32 %v1933, %v1934
        %v1936 = vrot.slane %v1935, 2
        %v1937 = vmax.f32 %v1935, %v1936
        %v1938 = vrot.slane %v1937, 1
        %v1939 = vmax.f32 %v1937, %v1938
        %v1940 = vmax.f32 %v1858, %v1859
        %v1941 = vrot.slane %v1940, 4
        %v1942 = vmax.f32 %v1940, %v1941
        %v1943 = vrot.slane %v1942, 2
        %v1944 = vmax.f32 %v1942, %v1943
        %v1945 = vrot.slane %v1944, 1
        %v1946 = vmax.f32 %v1944, %v1945
        %v1947 = vmax.f32 %v1860, %v1861
        %v1948 = vrot.slane %v1947, 4
        %v1949 = vmax.f32 %v1947, %v1948
        %v1950 = vrot.slane %v1949, 2
        %v1951 = vmax.f32 %v1949, %v1950
        %v1952 = vrot.slane %v1951, 1
        %v1953 = vmax.f32 %v1951, %v1952
        %v1954 = vmax.f32 %v1862, %v1863
        %v1955 = vrot.slane %v1954, 4
        %v1956 = vmax.f32 %v1954, %v1955
        %v1957 = vrot.slane %v1956, 2
        %v1958 = vmax.f32 %v1956, %v1957
        %v1959 = vrot.slane %v1958, 1
        %v1960 = vmax.f32 %v1958, %v1959
        %v1961 = vmax.f32 %v1864, %v1865
        %v1962 = vrot.slane %v1961, 4
        %v1963 = vmax.f32 %v1961, %v1962
        %v1964 = vrot.slane %v1963, 2
        %v1965 = vmax.f32 %v1963, %v1964
        %v1966 = vrot.slane %v1965, 1
        %v1967 = vmax.f32 %v1965, %v1966
        %v1968 = vmax.f32 %v1866, %v1867
        %v1969 = vrot.slane %v1968, 4
        %v1970 = vmax.f32 %v1968, %v1969
        %v1971 = vrot.slane %v1970, 2
        %v1972 = vmax.f32 %v1970, %v1971
        %v1973 = vrot.slane %v1972, 1
        %v1974 = vmax.f32 %v1972, %v1973
        %v1975 = vmax.f32 %v1868, %v1869
        %v1976 = vrot.slane %v1975, 4
        %v1977 = vmax.f32 %v1975, %v1976
        %v1978 = vrot.slane %v1977, 2
        %v1979 = vmax.f32 %v1977, %v1978
        %v1980 = vrot.slane %v1979, 1
        %v1981 = vmax.f32 %v1979, %v1980
        %1982 = vset.pattern.permute.xlu0 2
        %1983 = vperm.xlu0 %1982, %v1374
        %v1984 = vpop.permute.xlu0 %1983
        %1986 = vset.pattern.permute.xlu0 2
        %1987 = vperm.xlu0 %1986, %v1375
        %v1988 = vpop.permute.xlu0 %1987
        %1990 = vset.pattern.permute.xlu0 2
        %1991 = vperm.xlu0 %1990, %v1376
        %v1992 = vpop.permute.xlu0 %1991
        %1994 = vset.pattern.permute.xlu0 2
        %1995 = vperm.xlu0 %1994, %v1377
        %v1996 = vpop.permute.xlu0 %1995
        %1998 = vset.pattern.permute.xlu0 2
        %1999 = vperm.xlu0 %1998, %v1378
        %v2000 = vpop.permute.xlu0 %1999
        %2002 = vset.pattern.permute.xlu0 2
        %2003 = vperm.xlu0 %2002, %v1379
        %v2004 = vpop.permute.xlu0 %2003
        %2006 = vset.pattern.permute.xlu0 2
        %2007 = vperm.xlu0 %2006, %v1380
        %v2008 = vpop.permute.xlu0 %2007
        %2010 = vset.pattern.permute.xlu0 2
        %2011 = vperm.xlu0 %2010, %v1381
        %v2012 = vpop.permute.xlu0 %2011
        %2014 = vset.pattern.permute.xlu0 2
        %2015 = vperm.xlu0 %2014, %v1382
        %v2016 = vpop.permute.xlu0 %2015
        %2018 = vset.pattern.permute.xlu0 2
        %2019 = vperm.xlu0 %2018, %v1383
        %v2020 = vpop.permute.xlu0 %2019
        %2022 = vset.pattern.permute.xlu0 2
        %2023 = vperm.xlu0 %2022, %v1384
        %v2024 = vpop.permute.xlu0 %2023
        %2026 = vset.pattern.permute.xlu0 2
        %2027 = vperm.xlu0 %2026, %v1385
        %v2028 = vpop.permute.xlu0 %2027
        %2030 = vset.pattern.permute.xlu0 2
        %2031 = vperm.xlu0 %2030, %v1386
        %v2032 = vpop.permute.xlu0 %2031
        %2034 = vset.pattern.permute.xlu0 2
        %2035 = vperm.xlu0 %2034, %v1387
        %v2036 = vpop.permute.xlu0 %2035
        %2038 = vset.pattern.permute.xlu0 2
        %2039 = vperm.xlu0 %2038, %v1388
        %v2040 = vpop.permute.xlu0 %2039
        %2042 = vset.pattern.permute.xlu0 2
        %2043 = vperm.xlu0 %2042, %v1389
        %v2044 = vpop.permute.xlu0 %2043
        %2046 = vset.pattern.permute.xlu0 2
        %2047 = vperm.xlu0 %2046, %v1390
        %v2048 = vpop.permute.xlu0 %2047
        %2050 = vset.pattern.permute.xlu0 2
        %2051 = vperm.xlu0 %2050, %v1391
        %v2052 = vpop.permute.xlu0 %2051
        %2054 = vset.pattern.permute.xlu0 2
        %2055 = vperm.xlu0 %2054, %v1392
        %v2056 = vpop.permute.xlu0 %2055
        %2058 = vset.pattern.permute.xlu0 2
        %2059 = vperm.xlu0 %2058, %v1393
        %v2060 = vpop.permute.xlu0 %2059
        %2062 = vset.pattern.permute.xlu0 2
        %2063 = vperm.xlu0 %2062, %v1394
        %v2064 = vpop.permute.xlu0 %2063
        %2066 = vset.pattern.permute.xlu0 2
        %2067 = vperm.xlu0 %2066, %v1395
        %v2068 = vpop.permute.xlu0 %2067
        %2070 = vset.pattern.permute.xlu0 2
        %2071 = vperm.xlu0 %2070, %v1396
        %v2072 = vpop.permute.xlu0 %2071
        %2074 = vset.pattern.permute.xlu0 2
        %2075 = vperm.xlu0 %2074, %v1397
        %v2076 = vpop.permute.xlu0 %2075
        %2078 = vset.pattern.permute.xlu0 2
        %2079 = vperm.xlu0 %2078, %v1398
        %v2080 = vpop.permute.xlu0 %2079
        %2082 = vset.pattern.permute.xlu0 2
        %2083 = vperm.xlu0 %2082, %v1399
        %v2084 = vpop.permute.xlu0 %2083
        %2086 = vset.pattern.permute.xlu0 2
        %2087 = vperm.xlu0 %2086, %v1400
        %v2088 = vpop.permute.xlu0 %2087
        %2090 = vset.pattern.permute.xlu0 2
        %2091 = vperm.xlu0 %2090, %v1401
        %v2092 = vpop.permute.xlu0 %2091
        %2094 = vset.pattern.permute.xlu0 2
        %2095 = vperm.xlu0 %2094, %v1402
        %v2096 = vpop.permute.xlu0 %2095
        %2098 = vset.pattern.permute.xlu0 2
        %2099 = vperm.xlu0 %2098, %v1403
        %v2100 = vpop.permute.xlu0 %2099
        %2102 = vset.pattern.permute.xlu0 2
        %2103 = vperm.xlu0 %2102, %v1404
        %v2104 = vpop.permute.xlu0 %2103
        %2106 = vset.pattern.permute.xlu0 2
        %2107 = vperm.xlu0 %2106, %v1405
        %v2108 = vpop.permute.xlu0 %2107
        %v2110 = vadd.f32 %v1342, %v1984
        %v2111 = vadd.f32 %v1343, %v1988
        %v2112 = vadd.f32 %v1344, %v1992
        %v2113 = vadd.f32 %v1345, %v1996
        %v2114 = vadd.f32 %v1346, %v2000
        %v2115 = vadd.f32 %v1347, %v2004
        %v2116 = vadd.f32 %v1348, %v2008
        %v2117 = vadd.f32 %v1349, %v2012
        %v2118 = vadd.f32 %v1350, %v2016
        %v2119 = vadd.f32 %v1351, %v2020
        %v2120 = vadd.f32 %v1352, %v2024
        %v2121 = vadd.f32 %v1353, %v2028
        %v2122 = vadd.f32 %v1354, %v2032
        %v2123 = vadd.f32 %v1355, %v2036
        %v2124 = vadd.f32 %v1356, %v2040
        %v2125 = vadd.f32 %v1357, %v2044
        %v2126 = vadd.f32 %v1358, %v2048
        %v2127 = vadd.f32 %v1359, %v2052
        %v2128 = vadd.f32 %v1360, %v2056
        %v2129 = vadd.f32 %v1361, %v2060
        %v2130 = vadd.f32 %v1362, %v2064
        %v2131 = vadd.f32 %v1363, %v2068
        %v2132 = vadd.f32 %v1364, %v2072
        %v2133 = vadd.f32 %v1365, %v2076
        %v2134 = vadd.f32 %v1366, %v2080
        %v2135 = vadd.f32 %v1367, %v2084
        %v2136 = vadd.f32 %v1368, %v2088
        %v2137 = vadd.f32 %v1369, %v2092
        %v2138 = vadd.f32 %v1370, %v2096
        %v2139 = vadd.f32 %v1371, %v2100
        %v2140 = vadd.f32 %v1372, %v2104
        %v2141 = vadd.f32 %v1373, %v2108
        %v2142 = vmax.f32 %v2110, %v2111
        %v2143 = vrot.slane %v2142, 4
        %v2144 = vmax.f32 %v2142, %v2143
        %v2145 = vrot.slane %v2144, 2
        %v2146 = vmax.f32 %v2144, %v2145
        %v2147 = vrot.slane %v2146, 1
        %v2148 = vmax.f32 %v2146, %v2147
        %v2149 = vmax.f32 %v2112, %v2113
        %v2150 = vrot.slane %v2149, 4
        %v2151 = vmax.f32 %v2149, %v2150
        %v2152 = vrot.slane %v2151, 2
        %v2153 = vmax.f32 %v2151, %v2152
        %v2154 = vrot.slane %v2153, 1
        %v2155 = vmax.f32 %v2153, %v2154
        %v2156 = vmax.f32 %v2114, %v2115
        %v2157 = vrot.slane %v2156, 4
        %v2158 = vmax.f32 %v2156, %v2157
        %v2159 = vrot.slane %v2158, 2
        %v2160 = vmax.f32 %v2158, %v2159
        %v2161 = vrot.slane %v2160, 1
        %v2162 = vmax.f32 %v2160, %v2161
        %v2163 = vmax.f32 %v2116, %v2117
        %v2164 = vrot.slane %v2163, 4
        %v2165 = vmax.f32 %v2163, %v2164
        %v2166 = vrot.slane %v2165, 2
        %v2167 = vmax.f32 %v2165, %v2166
        %v2168 = vrot.slane %v2167, 1
        %v2169 = vmax.f32 %v2167, %v2168
        %v2170 = vmax.f32 %v2118, %v2119
        %v2171 = vrot.slane %v2170, 4
        %v2172 = vmax.f32 %v2170, %v2171
        %v2173 = vrot.slane %v2172, 2
        %v2174 = vmax.f32 %v2172, %v2173
        %v2175 = vrot.slane %v2174, 1
        %v2176 = vmax.f32 %v2174, %v2175
        %v2177 = vmax.f32 %v2120, %v2121
        %v2178 = vrot.slane %v2177, 4
        %v2179 = vmax.f32 %v2177, %v2178
        %v2180 = vrot.slane %v2179, 2
        %v2181 = vmax.f32 %v2179, %v2180
        %v2182 = vrot.slane %v2181, 1
        %v2183 = vmax.f32 %v2181, %v2182
        %v2184 = vmax.f32 %v2122, %v2123
        %v2185 = vrot.slane %v2184, 4
        %v2186 = vmax.f32 %v2184, %v2185
        %v2187 = vrot.slane %v2186, 2
        %v2188 = vmax.f32 %v2186, %v2187
        %v2189 = vrot.slane %v2188, 1
        %v2190 = vmax.f32 %v2188, %v2189
        %v2191 = vmax.f32 %v2124, %v2125
        %v2192 = vrot.slane %v2191, 4
        %v2193 = vmax.f32 %v2191, %v2192
        %v2194 = vrot.slane %v2193, 2
        %v2195 = vmax.f32 %v2193, %v2194
        %v2196 = vrot.slane %v2195, 1
        %v2197 = vmax.f32 %v2195, %v2196
        %v2198 = vmax.f32 %v2126, %v2127
        %v2199 = vrot.slane %v2198, 4
        %v2200 = vmax.f32 %v2198, %v2199
        %v2201 = vrot.slane %v2200, 2
        %v2202 = vmax.f32 %v2200, %v2201
        %v2203 = vrot.slane %v2202, 1
        %v2204 = vmax.f32 %v2202, %v2203
        %v2205 = vmax.f32 %v2128, %v2129
        %v2206 = vrot.slane %v2205, 4
        %v2207 = vmax.f32 %v2205, %v2206
        %v2208 = vrot.slane %v2207, 2
        %v2209 = vmax.f32 %v2207, %v2208
        %v2210 = vrot.slane %v2209, 1
        %v2211 = vmax.f32 %v2209, %v2210
        %v2212 = vmax.f32 %v2130, %v2131
        %v2213 = vrot.slane %v2212, 4
        %v2214 = vmax.f32 %v2212, %v2213
        %v2215 = vrot.slane %v2214, 2
        %v2216 = vmax.f32 %v2214, %v2215
        %v2217 = vrot.slane %v2216, 1
        %v2218 = vmax.f32 %v2216, %v2217
        %v2219 = vmax.f32 %v2132, %v2133
        %v2220 = vrot.slane %v2219, 4
        %v2221 = vmax.f32 %v2219, %v2220
        %v2222 = vrot.slane %v2221, 2
        %v2223 = vmax.f32 %v2221, %v2222
        %v2224 = vrot.slane %v2223, 1
        %v2225 = vmax.f32 %v2223, %v2224
        %v2226 = vmax.f32 %v2134, %v2135
        %v2227 = vrot.slane %v2226, 4
        %v2228 = vmax.f32 %v2226, %v2227
        %v2229 = vrot.slane %v2228, 2
        %v2230 = vmax.f32 %v2228, %v2229
        %v2231 = vrot.slane %v2230, 1
        %v2232 = vmax.f32 %v2230, %v2231
        %v2233 = vmax.f32 %v2136, %v2137
        %v2234 = vrot.slane %v2233, 4
        %v2235 = vmax.f32 %v2233, %v2234
        %v2236 = vrot.slane %v2235, 2
        %v2237 = vmax.f32 %v2235, %v2236
        %v2238 = vrot.slane %v2237, 1
        %v2239 = vmax.f32 %v2237, %v2238
        %v2240 = vmax.f32 %v2138, %v2139
        %v2241 = vrot.slane %v2240, 4
        %v2242 = vmax.f32 %v2240, %v2241
        %v2243 = vrot.slane %v2242, 2
        %v2244 = vmax.f32 %v2242, %v2243
        %v2245 = vrot.slane %v2244, 1
        %v2246 = vmax.f32 %v2244, %v2245
        %v2247 = vmax.f32 %v2140, %v2141
        %v2248 = vrot.slane %v2247, 4
        %v2249 = vmax.f32 %v2247, %v2248
        %v2250 = vrot.slane %v2249, 2
        %v2251 = vmax.f32 %v2249, %v2250
        %v2252 = vrot.slane %v2251, 1
        %v2253 = vmax.f32 %v2251, %v2252
        %vm2270 = vcmask 1041409
        %v2271 = vsel %vm2270, %v1611, %v1604
        %vm2272 = vcmask 1042434
        %v2273 = vsel %vm2272, %v1618, %v2271
        %vm2274 = vcmask 1043459
        %v2275 = vsel %vm2274, %v1625, %v2273
        %vm2276 = vcmask 1044484
        %v2277 = vsel %vm2276, %v1632, %v2275
        %vm2278 = vcmask 1045509
        %v2279 = vsel %vm2278, %v1639, %v2277
        %vm2280 = vcmask 1046534
        %v2281 = vsel %vm2280, %v1646, %v2279
        %vm2282 = vcmask 1047559
        %v2283 = vsel %vm2282, %v1653, %v2281
        %v2284 = vsel %vm2270, %v1667, %v1660
        %v2285 = vsel %vm2272, %v1674, %v2284
        %v2286 = vsel %vm2274, %v1681, %v2285
        %v2287 = vsel %vm2276, %v1688, %v2286
        %v2288 = vsel %vm2278, %v1695, %v2287
        %v2289 = vsel %vm2280, %v1702, %v2288
        %v2290 = vsel %vm2282, %v1709, %v2289
        %v2309 = vsel %vm2270, %v1883, %v1876
        %v2310 = vsel %vm2272, %v1890, %v2309
        %v2311 = vsel %vm2274, %v1897, %v2310
        %v2312 = vsel %vm2276, %v1904, %v2311
        %v2313 = vsel %vm2278, %v1911, %v2312
        %v2314 = vsel %vm2280, %v1918, %v2313
        %v2315 = vsel %vm2282, %v1925, %v2314
        %v2316 = vsel %vm2270, %v1939, %v1932
        %v2317 = vsel %vm2272, %v1946, %v2316
        %v2318 = vsel %vm2274, %v1953, %v2317
        %v2319 = vsel %vm2276, %v1960, %v2318
        %v2320 = vsel %vm2278, %v1967, %v2319
        %v2321 = vsel %vm2280, %v1974, %v2320
        %v2322 = vsel %vm2282, %v1981, %v2321
        %v2341 = vsel %vm2270, %v2155, %v2148
        %v2342 = vsel %vm2272, %v2162, %v2341
        %v2343 = vsel %vm2274, %v2169, %v2342
        %v2344 = vsel %vm2276, %v2176, %v2343
        %v2345 = vsel %vm2278, %v2183, %v2344
        %v2346 = vsel %vm2280, %v2190, %v2345
        %v2347 = vsel %vm2282, %v2197, %v2346
        %v2348 = vsel %vm2270, %v2211, %v2204
        %v2349 = vsel %vm2272, %v2218, %v2348
        %v2350 = vsel %vm2274, %v2225, %v2349
        %v2351 = vsel %vm2276, %v2232, %v2350
        %v2352 = vsel %vm2278, %v2239, %v2351
        %v2353 = vsel %vm2280, %v2246, %v2352
        %v2354 = vsel %vm2282, %v2253, %v2353
        %v2357 = vld [vmem:[%s3] sm:$0x7]
        %v2359 = vlaneseq
        %v2360 = vshrl.u32 %v2359, 7
        %v2361 = vsub.s32 0, %v2360
        %v2362 = vrot.slane %v2357, %v2361
        %v2363 = vlaneseq
        %v2364 = vshrl.u32 %v2363, 7
        %v2365 = vsub.s32 1, %v2364
        %v2366 = vrot.slane %v2357, %v2365
        %v2367 = vlaneseq
        %v2368 = vshrl.u32 %v2367, 7
        %v2369 = vsub.s32 2, %v2368
        %v2370 = vrot.slane %v2357, %v2369
        %v2374 = vadd.f32 %v2283, %v2362
        %v2375 = vadd.f32 %v2315, %v2366
        %v2376 = vadd.f32 %v2347, %v2370
        %v2377 = vadd.f32 %v2290, %v2362
        %v2378 = vadd.f32 %v2322, %v2366
        %v2379 = vadd.f32 %v2354, %v2370
        %v2380 = vmax.f32 %v2374, 0.0
        %v2381 = vmax.f32 %v2375, 0.0
        %v2382 = vmax.f32 %v2376, 0.0
        %v2383 = vmax.f32 %v2377, 0.0
        %v2384 = vmax.f32 %v2378, 0.0
        %v2385 = vmax.f32 %v2379, 0.0
        %v2386 = vpack.c.bf16 %v2383, %v2380
        %v2387 = vpack.c.bf16 %v2384, %v2381
        %v2388 = vpack.c.bf16 %v2385, %v2382
        %v2392 = vunpack.c.l.b16 %v2386
        %v2393 = vunpack.c.l.b16 %v2387
        %v2394 = vunpack.c.l.b16 %v2388
        %v2395 = vunpack.c.h.b16 %v2386
        %v2396 = vunpack.c.h.b16 %v2387
        %v2397 = vunpack.c.h.b16 %v2388
        %v2398 = vpack.c.b16 %v2393, %v2392
        %v2399 = vpack.c.b16 %v2394, %v2394
        %v2400 = vpack.c.b16 %v2396, %v2395
        %v2401 = vpack.c.b16 %v2397, %v2397
        %2406 = vst [vmem:[%s209] sm:$0xff] %v2398
        %2407 = vst [vmem:[%s209 + $0x8] sm:$0xf] %v2399
        %2408 = vst [vmem:[%s209 + $0xc] sm:$0xff] %v2400
        %2409 = vst [vmem:[%s209 + $0x14] sm:$0xf] %v2401
        %s2410 = sand.u32 %s120, 1
        %s2411 = scalar_lea.sflag [#allocation3], %s2410
        %s2412 = sand.u32 %s120, 1
        %s2413 = smul.addr %s2412, 24
        %s2414 = scalar_lea.vmem [#allocation2], %s2413
        // Predicated region
        $region37: #{tpu_custom_call.1} parent=35 // pred_check
          %p2415 = pneg %p130
        $region38: #{tpu_custom_call.1} parent=35 // pred_check_branch
          %2417 = sbr.rel (%p2415) target = $region40
        $region39: #{tpu_custom_call.1} parent=35 // pred_region
          %s2418 = smul.u32 2, %s18
          %s2420 = ssub.s32 384, 384
          %2421 = vsyncadd %s2411, %s2420
          %s2422 = smul.addr %s2418, 3
          %s2423 = smul.addr %s2422, 64
          %s2424 = scalar_lea.hbm %s4, %s2423
          %s2425 = sshll.u32 %s2414, 4
          %s2426 = int_to_ptr.vmem [resolvable:$true] %s2425
          %2431 = dma.vmem_to_hbm [thread:$0]  %s2426, 384, %s2424, %s2411, 192, 192, 12
        $region40: #{tpu_custom_call.1} parent=35 // pred_fallthru
          _
      $region36: #{tpu_custom_call.1} parent=5 // pred_fallthru
        _
      %p2432 = scmp.le.s32.totalorder 2, %s13
      // Predicated region
      $region41: #{tpu_custom_call.1} parent=5 // pred_check
        %p2433 = pneg %p2432
      $region42: #{tpu_custom_call.1} parent=5 // pred_check_branch
        %2435 = sbr.rel (%p2433) target = $region44
      $region43: #{tpu_custom_call.1} parent=5 // pred_region
        %s2436 = ssub.s32 %s13, 2
        // Predicated region
        $region45: #{tpu_custom_call.1} parent=43 // pred_check
          %p2437 = pneg %p136
        $region46: #{tpu_custom_call.1} parent=43 // pred_check_branch
          %2439 = sbr.rel (%p2437) target = $region48
        $region47: #{tpu_custom_call.1} parent=43 // pred_region
          %s2440 = sand.u32 %s121, 1
          %s2441 = scalar_lea.sflag [#allocation3], %s2440
          %s2442 = sand.u32 %s121, 1
          %s2443 = smul.addr %s2442, 24
          %s2444 = scalar_lea.vmem [#allocation2], %s2443
          %2445 = dma.done %s2441, 384
        $region48: #{tpu_custom_call.1} parent=43 // pred_fallthru
          _
      $region44: #{tpu_custom_call.1} parent=5 // pred_fallthru
        _
    $region6: #{tpu_custom_call.1} parent=1 // loop_footer
      %s17 = sadd.s32 1, %s13
    $region7: #{tpu_custom_call.1} parent=1 // loop_footer_branch
      %12 = sbr.rel target = $region3
    $region8: #{tpu_custom_call.1} parent=1 // loop_exit
      _
    %2446 = vsyncpa [#allocation3], 1
    %s2447 = scalar_lea.sflag [#allocation3], 1
    %2448 = vsyncpa %s2447, 1

</llo_original>
